<compile_context>
chip_gen: v7x
topology: tpu7x:2x2x1
jax: 0.10.0
libtpu: 0.0.40
codegen_flags: <defaults>
</compile_context>

<pallas_src>
import functools

import jax
import jax.numpy as jnp
from jax.experimental import pallas as pl
from jax.experimental.pallas import tpu as pltpu


_VMEM_LIMIT = 32 * 1024 * 1024


# ----------------------------------------------------------------------------
# helpers
# ----------------------------------------------------------------------------
def _round_up(x, m):
    return ((x + m - 1) // m) * m


def _pick_group(n, per_item_bytes, budget=4 << 20):
    """Images per grid step: amortize per-step overhead but keep >=2 steps."""
    g = max(1, min(n, budget // max(per_item_bytes, 1)))
    while n % g:
        g -= 1
    if g == n and n > 1:          # keep at least two grid steps
        g = max(1, g // 2)
        while n % g:
            g -= 1
    return g


# ----------------------------------------------------------------------------
# Pallas kernels
# ----------------------------------------------------------------------------
def _gemm_stats_kernel(cols_ref, w_ref, y_ref, st_ref):
    """y = cols @ w (bf16 in, f32 acc, bf16 out) + per-tile column sum/sumsq."""
    y = jnp.dot(cols_ref[...], w_ref[...], preferred_element_type=jnp.float32)
    y_ref[...] = y.astype(y_ref.dtype)
    st_ref[0] = jnp.concatenate(
        [jnp.sum(y, axis=0, keepdims=True),
         jnp.sum(y * y, axis=0, keepdims=True)], axis=0)


def _conv3x3_kernel(x_ref, w_ref, y_ref, st_ref, *, wp2, wd):
    """Direct 3x3 stride-1 'same' conv on a group of images.

    x_ref:  (g, (H+2)*(W+2)+2, C) bf16, zero-padded images flattened row-major
            over the padded (H+2, W+2) grid (+2 slack rows).
    w_ref:  (9, C, Cout) bf16, tap t = dr*3 + dc.
    y_ref:  (g, H*(W+2), Cout) bf16 (junk columns discarded by the caller).
    st_ref: (1, 2, Cout) f32: masked column sum / sum-of-squares over the group.
    """
    g = x_ref.shape[0]
    m, cout = y_ref.shape[1], y_ref.shape[2]
    # valid-output-column mask (junk columns come from the flattened W padding)
    col = jax.lax.broadcasted_iota(jnp.int32, (m, 1), 0) % wp2
    mask = (col < wd).astype(jnp.float32)
    w = w_ref[...]                                   # hoisted weight load
    s = jnp.zeros((1, cout), jnp.float32)
    ss = jnp.zeros((1, cout), jnp.float32)
    for ig in range(g):
        # local f32 accumulator: the 9 MXU results never round-trip the ref
        acc = jnp.dot(x_ref[ig, 0:m, :], w[0],
                      preferred_element_type=jnp.float32)
        for dr in range(3):
            for dc in range(3):
                if dr == 0 and dc == 0:
                    continue
                off = dr * wp2 + dc
                acc = acc + jnp.dot(x_ref[ig, off:off + m, :], w[dr * 3 + dc],
                                    preferred_element_type=jnp.float32)
        y_ref[ig] = acc.astype(y_ref.dtype)          # single store
        am = acc * mask
        s = s + jnp.sum(am, axis=0, keepdims=True)
        ss = ss + jnp.sum(am * am, axis=0, keepdims=True)
    st_ref[0] = jnp.concatenate([s, ss], axis=0)


def _affine_kernel(*refs, relu, has_res, has_post):
    """out = post_affine( relu( y*scale + shift (+ residual) ) ), lane-folded."""
    i = 0
    y_ref = refs[i]; i += 1
    s_ref = refs[i]; i += 1
    b_ref = refs[i]; i += 1
    r_ref = None
    if has_res:
        r_ref = refs[i]; i += 1
    ps_ref = pb_ref = None
    if has_post:
        ps_ref = refs[i]; i += 1
        pb_ref = refs[i]; i += 1
    o_ref = refs[i]

    y = y_ref[...].astype(jnp.float32) * s_ref[...] + b_ref[...]
    if has_res:
        y = y + r_ref[...].astype(jnp.float32)
    if relu:
        y = jnp.maximum(y, 0.0)
    if has_post:
        y = y * ps_ref[...] + pb_ref[...]
    o_ref[...] = y.astype(o_ref.dtype)


def _maxpool3x3s2_kernel(x_ref, o_ref):
    """3x3 stride-2 max of one zero-padded (non-negative) image.

    x_ref: (1, 2, H+2, (W+2)//2, C), padded columns pre-split by parity so the
           stride-2 subsample needs only unit-stride slices / leading reshapes.
    o_ref: (1, H//2, W//2, C).
    """
    _, ho, wo, c = o_ref.shape
    xe = x_ref[0, 0]                       # even padded columns: (H+2, wq, C)
    xo = x_ref[0, 1]                       # odd  padded columns
    # horizontal 3-max at output stride 2: cols 2j, 2j+1, 2j+2
    h3 = jnp.maximum(jnp.maximum(xe[:, 0:wo, :], xo[:, 0:wo, :]),
                     xe[:, 1:wo + 1, :])   # (H+2, wo, C)
    h = 2 * ho
    a = h3[0:h].reshape(ho, 2, wo, c)      # rows 2i (a[:,0]) and 2i+1 (a[:,1])
    b = h3[2:h + 2].reshape(ho, 2, wo, c)  # rows 2i+2 (b[:,0])
    o_ref[0] = jnp.maximum(jnp.maximum(a[:, 0], a[:, 1]), b[:, 0])


def _posembed_adapt_kernel(x_ref, w_ref, b_ref, a_ref, o_ref, *, wp2):
    """Fused pos_embed[1] (depthwise 3x3x3, pad 1) + adapt_dim (1x1) per batch.

    x_ref: (1, F+2, (H+2)*(W+2)+2, C) bf16, zero-padded, per-frame flattened.
    w_ref: (27, C) f32 depthwise taps (t = df*9 + dh*3 + dw); b_ref: (1, C) f32.
    a_ref: (F, C, Cout) bf16 adapt weights, a[f, c, o] = torch_w[o, c*F + f].
    o_ref: (1, H*(W+2), Cout) f32 (junk columns sliced off by the caller).
    """
    m, cout = o_ref.shape[1], o_ref.shape[2]
    c = x_ref.shape[-1]
    f_dim = x_ref.shape[1] - 2
    w27 = w_ref[...]                       # hoisted out of the loops
    bias = b_ref[...]
    acc = jnp.zeros((m, cout), jnp.float32)
    for f in range(f_dim):
        d = jnp.zeros((m, c), jnp.float32) + bias
        for df in range(3):
            for dh in range(3):
                for dw in range(3):
                    t = df * 9 + dh * 3 + dw
                    off = dh * wp2 + dw
                    d = d + (x_ref[0, f + df, off:off + m, :]
                             .astype(jnp.float32) * w27[t, :])
        acc = acc + jnp.dot(d.astype(jnp.bfloat16), a_ref[f],
                            preferred_element_type=jnp.float32)
    o_ref[0] = acc


# ----------------------------------------------------------------------------
# Pallas wrappers
# ----------------------------------------------------------------------------
def gemm_bnstats(cols, w, tm=512):
    """Tiled GEMM (bf16 MXU, f32 acc, bf16 out) emitting BN partial sums."""
    m, k = cols.shape
    cout = w.shape[1]
    assert k == w.shape[0] and k % 128 == 0
    tm_eff = min(tm, _round_up(max(8, (m + 1) // 2), 8))   # >=2 grid steps
    mp = _round_up(m, tm_eff)
    if mp != m:
        cols = jnp.pad(cols, ((0, mp - m), (0, 0)))        # zero rows: no-op sums
    grid_m = mp // tm_eff
    y, stats = pl.pallas_call(
        _gemm_stats_kernel,
        out_shape=(jax.ShapeDtypeStruct((mp, cout), jnp.bfloat16),
                   jax.ShapeDtypeStruct((grid_m, 2, cout), jnp.float32)),
        grid=(grid_m,),
        in_specs=[pl.BlockSpec((tm_eff, k), lambda i: (i, 0)),
                  pl.BlockSpec((k, cout), lambda i: (0, 0))],
        out_specs=(pl.BlockSpec((tm_eff, cout), lambda i: (i, 0)),
                   pl.BlockSpec((1, 2, cout), lambda i: (i, 0, 0))),
        compiler_params=pltpu.CompilerParams(
            dimension_semantics=("parallel",),
            vmem_limit_bytes=_VMEM_LIMIT),
    )(cols, w)
    return y[:m], stats


def conv3x3_bnstats(x, w9):
    """Direct 3x3/1 'same' conv (no HBM im2col) + per-group BN partial sums.

    x: (N, H, W, C) bf16 activation, w9: (9, C, Cout) bf16.
    Returns y: (N*H*W, Cout) bf16 and stats: (G, 2, Cout) f32.
    """
    n, h, wd, c = x.shape
    cout = w9.shape[2]
    wp2 = wd + 2
    m = h * wp2
    big_l = (h + 2) * wp2 + 2
    xp = jnp.pad(x, ((0, 0), (1, 1), (1, 1), (0, 0)))
    xf = jnp.pad(xp.reshape(n, (h + 2) * wp2, c), ((0, 0), (0, 2), (0, 0)))
    per_img = (big_l * c + m * cout) * 2 + m * cout * 4
    g = _pick_group(n, per_img)
    grid = n // g

    kern = functools.partial(_conv3x3_kernel, wp2=wp2, wd=wd)
    yfull, stats = pl.pallas_call(
        kern,
        out_shape=(jax.ShapeDtypeStruct((n, m, cout), jnp.bfloat16),
                   jax.ShapeDtypeStruct((grid, 2, cout), jnp.float32)),
        grid=(grid,),
        in_specs=[pl.BlockSpec((g, big_l, c), lambda i: (i, 0, 0)),
                  pl.BlockSpec((9, c, cout), lambda i: (0, 0, 0))],
        out_specs=(pl.BlockSpec((g, m, cout), lambda i: (i, 0, 0)),
                   pl.BlockSpec((1, 2, cout), lambda i: (i, 0, 0))),
        compiler_params=pltpu.CompilerParams(
            dimension_semantics=("parallel",),
            vmem_limit_bytes=_VMEM_LIMIT),
    )(xf, w9)
    y = yfull.reshape(n, h, wp2, cout)[:, :, :wd, :].reshape(n * h * wd, cout)
    return y, stats


def bn_scale_shift(stats, m_true, gamma, beta, eps=1e-5):
    """Finalize batch statistics (tiny per-channel math, done in JAX glue)."""
    s = jnp.sum(stats[:, 0, :], axis=0)
    ss = jnp.sum(stats[:, 1, :], axis=0)
    mean = s / m_true
    var = jnp.maximum(ss / m_true - mean * mean, 0.0)   # biased, train-mode
    scale = gamma * jax.lax.rsqrt(var + eps)
    shift = beta - mean * scale
    return scale, shift


def affine_apply(y, scale, shift, residual=None, relu=False,
                 post_scale=None, post_shift=None, tr=1024):
    """BN pass-2: out = post(relu(y*scale + shift (+res))) on (M, C) rows.

    Rows are lane-folded (C -> C*fold >= 512 when possible) so loads/stores
    are lane-dense; output is bf16 (the consumers want bf16 anyway).
    """
    m, c = y.shape
    fold = 1
    for f in (8, 4, 2):
        if m % f == 0:
            fold = f
            break
    mf, cf = m // fold, c * fold
    y2 = y.reshape(mf, cf)
    r2 = residual.reshape(mf, cf) if residual is not None else None

    tr_eff = min(tr, _round_up(max(8, (mf + 1) // 2), 8))   # >=2 steps if possible
    mp = _round_up(mf, tr_eff)
    if mp != mf:
        y2 = jnp.pad(y2, ((0, mp - mf), (0, 0)))
        if r2 is not None:
            r2 = jnp.pad(r2, ((0, mp - mf), (0, 0)))

    def vec(v):
        return jnp.tile(v.astype(jnp.float32), fold).reshape(1, cf)

    args = [y2, vec(scale), vec(shift)]
    in_specs = [pl.BlockSpec((tr_eff, cf), lambda i: (i, 0)),
                pl.BlockSpec((1, cf), lambda i: (0, 0)),
                pl.BlockSpec((1, cf), lambda i: (0, 0))]
    if r2 is not None:
        args.append(r2)
        in_specs.append(pl.BlockSpec((tr_eff, cf), lambda i: (i, 0)))
    has_post = post_scale is not None
    if has_post:
        args += [vec(post_scale), vec(post_shift)]
        in_specs += [pl.BlockSpec((1, cf), lambda i: (0, 0)),
                     pl.BlockSpec((1, cf), lambda i: (0, 0))]

    kern = functools.partial(_affine_kernel, relu=relu,
                             has_res=r2 is not None, has_post=has_post)
    out = pl.pallas_call(
        kern,
        out_shape=jax.ShapeDtypeStruct((mp, cf), jnp.bfloat16),
        grid=(mp // tr_eff,),
        in_specs=in_specs,
        out_specs=pl.BlockSpec((tr_eff, cf), lambda i: (i, 0)),
        compiler_params=pltpu.CompilerParams(
            dimension_semantics=("parallel",)),
    )(*args)
    return out[:mf].reshape(m, c)


def maxpool3x3_stride2(y):
    """3x3/2 max-pool with padding 1 on a non-negative (post-ReLU) NHWC map."""
    n, h, w, c = y.shape
    assert h % 2 == 0 and w % 2 == 0
    ho, wo, wq = h // 2, w // 2, (w + 2) // 2
    yp = jnp.pad(y, ((0, 0), (1, 1), (1, 1), (0, 0)))   # 0-pad is safe post-ReLU
    # split padded columns by parity (free reshape + tiny transpose in XLA)
    yp = yp.reshape(n, h + 2, wq, 2, c).transpose(0, 3, 1, 2, 4)
    return pl.pallas_call(
        _maxpool3x3s2_kernel,
        out_shape=jax.ShapeDtypeStruct((n, ho, wo, c), y.dtype),
        grid=(n,),
        in_specs=[pl.BlockSpec((1, 2, h + 2, wq, c), lambda i: (i, 0, 0, 0, 0))],
        out_specs=pl.BlockSpec((1, ho, wo, c), lambda i: (i, 0, 0, 0)),
        compiler_params=pltpu.CompilerParams(
            dimension_semantics=("parallel",),
            vmem_limit_bytes=_VMEM_LIMIT),
    )(yp)


def posembed_adapt(x5, w27, bias, adapt_w):
    """pos_embed[1] (depthwise 3x3x3, pad 1) fused with adapt_dim (1x1 conv).

    x5: (B, F, H, W, C) bf16 (pos_embed[0] already fused upstream).
    Returns (B, H, W, Cout) f32; the depthwise output never touches HBM.
    """
    b, f, h, w, c = x5.shape
    cout = adapt_w.shape[2]
    wp2 = w + 2
    m = h * wp2
    big_l = (h + 2) * wp2 + 2
    xp = jnp.pad(x5, ((0, 0), (1, 1), (1, 1), (1, 1), (0, 0)))
    xf = jnp.pad(xp.reshape(b, f + 2, (h + 2) * wp2, c),
                 ((0, 0), (0, 0), (0, 2), (0, 0)))
    kern = functools.partial(_posembed_adapt_kernel, wp2=wp2)
    out = pl.pallas_call(
        kern,
        out_shape=jax.ShapeDtypeStruct((b, m, cout), jnp.float32),
        grid=(b,),
        in_specs=[pl.BlockSpec((1, f + 2, big_l, c), lambda i: (i, 0, 0, 0)),
                  pl.BlockSpec((27, c), lambda i: (0, 0)),
                  pl.BlockSpec((1, c), lambda i: (0, 0)),
                  pl.BlockSpec((f, c, cout), lambda i: (0, 0, 0))],
        out_specs=pl.BlockSpec((1, m, cout), lambda i: (i, 0, 0)),
        compiler_params=pltpu.CompilerParams(
            dimension_semantics=("parallel",),
            vmem_limit_bytes=_VMEM_LIMIT),
    )(xf, w27, bias.reshape(1, c), adapt_w)
    return out.reshape(b, h, wp2, cout)[:, :, :w, :]


# ----------------------------------------------------------------------------
# JAX glue (stem im2col only; everything else stays un-expanded)
# ----------------------------------------------------------------------------
def _im2col(x, kh, kw, stride, pad, k_pad_to=None):
    """x NHWC -> (N*Ho*Wo, K); K index = (i*kw + j)*C + c, zero tap appended
    so the MXU K padding costs no extra full-size copy."""
    n, hh, ww, c = x.shape
    xp = jnp.pad(x, ((0, 0), (pad, pad), (pad, pad), (0, 0)))
    ho = (hh + 2 * pad - kh) // stride + 1
    wo = (ww + 2 * pad - kw) // stride + 1
    taps = []
    for i in range(kh):
        for j in range(kw):
            taps.append(xp[:, i:i + (ho - 1) * stride + 1:stride,
                              j:j + (wo - 1) * stride + 1:stride, :])
    k = kh * kw * c
    if k_pad_to is not None and k_pad_to > k:
        taps.append(jnp.zeros((n, ho, wo, k_pad_to - k), x.dtype))
        k = k_pad_to
    cols = jnp.concatenate(taps, axis=-1)
    return cols.reshape(n * ho * wo, k), ho, wo


# ----------------------------------------------------------------------------
# Parameters (deterministic synthetic init, torch layouts -> kernel layouts)
# ----------------------------------------------------------------------------
def _pack_conv_gemm_w(wt):
    """torch (Cout, Cin, KH, KW) -> (KH*KW*Cin, Cout) matching _im2col order."""
    cout, cin, kh, kw = wt.shape
    return jnp.transpose(wt, (2, 3, 1, 0)).reshape(kh * kw * cin, cout)


def _pack_conv3x3_w(wt):
    """torch (Cout, Cin, 3, 3) -> (9, Cin, Cout), tap t = dr*3 + dc."""
    cout, cin, kh, kw = wt.shape
    return jnp.transpose(wt, (2, 3, 1, 0)).reshape(kh * kw, cin, cout)


def init_params(key, focal_cnt):
    keys = iter(jax.random.split(key, 32))
    nrm = lambda shp, s: jax.random.normal(next(keys), shp, jnp.float32) * s
    p = {}
    # resnet34 stem: conv 7x7/2 (GEMM weight, K zero-padded to 256 at init)
    w1 = _pack_conv_gemm_w(nrm((64, 3, 7, 7), 0.05))
    kpad = _round_up(w1.shape[0], 128)
    p['conv1_w'] = jnp.pad(w1, ((0, kpad - w1.shape[0]), (0, 0))).astype(jnp.bfloat16)
    p['bn1_g'] = 1.0 + 0.1 * jax.random.normal(next(keys), (64,), jnp.float32)
    p['bn1_b'] = 0.1 * jax.random.normal(next(keys), (64,), jnp.float32)
    # layer1: 3 BasicBlocks (64 -> 64, stride 1)
    blocks = []
    for _ in range(3):
        blocks.append({
            'w1': _pack_conv3x3_w(nrm((64, 64, 3, 3), 0.05)).astype(jnp.bfloat16),
            'bn1_g': 1.0 + 0.1 * jax.random.normal(next(keys), (64,), jnp.float32),
            'bn1_b': 0.1 * jax.random.normal(next(keys), (64,), jnp.float32),
            'w2': _pack_conv3x3_w(nrm((64, 64, 3, 3), 0.05)).astype(jnp.bfloat16),
            'bn2_g': 1.0 + 0.1 * jax.random.normal(next(keys), (64,), jnp.float32),
            'bn2_b': 0.1 * jax.random.normal(next(keys), (64,), jnp.float32),
        })
    p['layer1'] = blocks
    # pos_embed[0]: Conv3d(64,64,k=1,groups=64) -> per-channel scale + bias
    p['pe1_w'] = nrm((64,), 0.3)
    p['pe1_b'] = nrm((64,), 0.1)
    # pos_embed[1]: Conv3d(64,64,k=3,pad=1,groups=64), weight (64,1,3,3,3)
    pe2 = nrm((64, 1, 3, 3, 3), 0.1)
    p['pe2_w27'] = pe2.reshape(64, 27).T            # (27, 64), t = df*9+dh*3+dw
    p['pe2_b'] = nrm((64,), 0.1)
    # adapt_dim: torch weight (64, 64*fo) with input index c*fo + f.
    # Reorder at init to (fo, c, out) so C stays on lanes at runtime.
    aw = nrm((64, 64 * focal_cnt), 0.05)
    aw = aw.reshape(64, 64, focal_cnt)              # (out, c, f)
    p['adapt_w'] = jnp.transpose(aw, (2, 1, 0)).astype(jnp.bfloat16)  # (f, c, out)
    return p


# ----------------------------------------------------------------------------
# Forward pass
# ----------------------------------------------------------------------------
def lsra_fusion_forward(x, params):
    """x: (B, fo, 3, H, W) NCHW -> (B, 64, H//4, W//4) NCHW."""
    bsz, fo, cin, h, w = x.shape
    n = bsz * fo
    xs = x.reshape(n, cin, h, w).transpose(0, 2, 3, 1).astype(jnp.bfloat16)  # NHWC

    # --- resnet stem: conv1 7x7/2 (im2col GEMM) + two-pass BN + ReLU ----------
    cols, ho, wo = _im2col(xs, 7, 7, 2, 3, k_pad_to=params['conv1_w'].shape[0])
    y, st = gemm_bnstats(cols, params['conv1_w'])
    sc, sh = bn_scale_shift(st, cols.shape[0], params['bn1_g'], params['bn1_b'])
    y = affine_apply(y, sc, sh, relu=True).reshape(n, ho, wo, 64)

    # --- maxpool 3x3/2 (stride-2 output computed in-kernel) -------------------
    y = maxpool3x3_stride2(y)
    hp, wp = y.shape[1], y.shape[2]
    m1 = n * hp * wp

    # --- layer1: 3 BasicBlocks ------------------------------------------------
    n_blocks = len(params['layer1'])
    for bi, blk in enumerate(params['layer1']):
        identity = y.reshape(m1, 64)
        c1, st1 = conv3x3_bnstats(y, blk['w1'])
        sc1, sh1 = bn_scale_shift(st1, m1, blk['bn1_g'], blk['bn1_b'])
        a1 = affine_apply(c1, sc1, sh1, relu=True).reshape(n, hp, wp, 64)
        c2, st2 = conv3x3_bnstats(a1, blk['w2'])
        sc2, sh2 = bn_scale_shift(st2, m1, blk['bn2_g'], blk['bn2_b'])
        last = bi == n_blocks - 1
        # for the last block, fuse pos_embed[0] (per-channel affine) here
        out_flat = affine_apply(
            c2, sc2, sh2, residual=identity, relu=True,
            post_scale=params['pe1_w'] if last else None,
            post_shift=params['pe1_b'] if last else None)
        y = out_flat.reshape(n, hp, wp, 64)

    # torch: reshape (B,fo,64,h4,w4).permute(0,2,1,3,4) == channels-last
    # (B, fo, h4, w4, 64), which is exactly our layout.
    y5 = y.reshape(bsz, fo, hp, wp, 64)

    # --- pos_embed[1] (depthwise 3x3x3) fused with adapt_dim (1x1) -------------
    out = posembed_adapt(y5, params['pe2_w27'], params['pe2_b'],
                         params['adapt_w'])                  # (B, hp, wp, 64) f32
    return out.transpose(0, 3, 1, 2)                         # back to NCHW


# ----------------------------------------------------------------------------
if __name__ == "__main__":
    B, fo, c, h, w = 2, 2, 3, 16, 16
    key = jax.random.PRNGKey(0)
    kx, kp = jax.random.split(key)
    x = jax.random.normal(kx, (B, fo, c, h, w), jnp.float32)
    params = init_params(kp, fo)

    fwd = jax.jit(lsra_fusion_forward)
    out = fwd(x, params)
    jax.block_until_ready(out)

    assert out.shape == (B, 64, h // 4, w // 4), out.shape
    assert out.dtype == jnp.float32
    assert bool(jnp.all(jnp.isfinite(out)))
    print("KERNEL_OK")
</pallas_src>

<mosaic_0001>
module attributes {stable_mosaic.version = 11 : i64} {
  func.func @_gemm_stats_kernel(%arg0: i32, %arg1: memref<128x256xbf16, #tpu.memory_space<vmem>>, %arg2: memref<256x64xbf16, #tpu.memory_space<vmem>>, %arg3: memref<128x64xbf16, #tpu.memory_space<vmem>>, %arg4: memref<1x2x64xf32, #tpu.memory_space<vmem>>) attributes {dimension_semantics = [#tpu.dimension_semantics<parallel>], iteration_bounds = array<i64: 2>, scalar_prefetch = 0 : i64, scratch_operands = 0 : i64, tpu.core_type = #tpu.core_type<tc>, window_params = [{transform_indices = @transform_0, window_bounds = array<i64: 128, 256>}, {pipeline_mode = #tpu.pipeline_mode<synchronous>, transform_indices = @transform_1, window_bounds = array<i64: 256, 64>}, {transform_indices = @transform_2, window_bounds = array<i64: 128, 64>}, {transform_indices = @transform_3, window_bounds = array<i64: 1, 2, 64>}]} {
    %c0 = arith.constant 0 : index
    %c0_0 = arith.constant 0 : index
    %0 = vector.load %arg1[%c0, %c0_0] : memref<128x256xbf16, #tpu.memory_space<vmem>>, vector<128x256xbf16>
    %c0_1 = arith.constant 0 : index
    %c0_2 = arith.constant 0 : index
    %1 = vector.load %arg2[%c0_1, %c0_2] : memref<256x64xbf16, #tpu.memory_space<vmem>>, vector<256x64xbf16>
    %cst = arith.constant dense<0.000000e+00> : vector<128x64xf32>
    %2 = tpu.matmul %0, %1, %cst {dimension_numbers = #tpu.dot_dimension_numbers<[1], [0], [0], [1], [0, 0, 1, 1], [], []>} : vector<128x256xbf16>, vector<256x64xbf16>, vector<128x64xf32> -> vector<128x64xf32>
    %3 = arith.truncf %2 : vector<128x64xf32> to vector<128x64xbf16>
    %c0_3 = arith.constant 0 : index
    %c0_4 = arith.constant 0 : index
    %4 = vector.load %arg3[%c0_3, %c0_4] : memref<128x64xbf16, #tpu.memory_space<vmem>>, vector<128x64xbf16>
    tpu.vector_store %arg3[%c0_3, %c0_4], %3 {strides = array<i32>} : memref<128x64xbf16, #tpu.memory_space<vmem>>, vector<128x64xbf16>,
    %cst_5 = arith.constant dense<0.000000e+00> : vector<64xf32>
    %5 = vector.multi_reduction <add>, %2, %cst_5 [0] : vector<128x64xf32> to vector<64xf32>
    %6 = vector.shape_cast %5 : vector<64xf32> to vector<1x64xf32>
    %7 = arith.mulf %2, %2 : vector<128x64xf32>
    %cst_6 = arith.constant dense<0.000000e+00> : vector<64xf32>
    %8 = vector.multi_reduction <add>, %7, %cst_6 [0] : vector<128x64xf32> to vector<64xf32>
    %9 = vector.shape_cast %8 : vector<64xf32> to vector<1x64xf32>
    %10 = tpu.concatenate %6, %9 in 0 : vector<1x64xf32>, vector<1x64xf32> -> vector<2x64xf32>
    %c0_7 = arith.constant 0 : index
    %c0_8 = arith.constant 0 : index
    %c0_9 = arith.constant 0 : index
    %11 = vector.load %arg4[%c0_7, %c0_8, %c0_9] : memref<1x2x64xf32, #tpu.memory_space<vmem>>, vector<1x2x64xf32>
    %12 = vector.shape_cast %11 : vector<1x2x64xf32> to vector<2x64xf32>
    %13 = vector.shape_cast %10 : vector<2x64xf32> to vector<1x2x64xf32>
    tpu.vector_store %arg4[%c0_7, %c0_8, %c0_9], %13 {strides = array<i32>} : memref<1x2x64xf32, #tpu.memory_space<vmem>>, vector<1x2x64xf32>,
    return
  }
  func.func @transform_0(%arg0: i32) -> (i32, i32) {
    %c0_i32 = arith.constant 0 : i32
    %c0_i32_0 = arith.constant 0 : i32
    return %arg0, %c0_i32 : i32, i32
  }
  func.func @transform_1(%arg0: i32) -> (i32, i32) {
    %c0_i32 = arith.constant 0 : i32
    %c0_i32_0 = arith.constant 0 : i32
    %c0_i32_1 = arith.constant 0 : i32
    return %c0_i32, %c0_i32_0 : i32, i32
  }
  func.func @transform_2(%arg0: i32) -> (i32, i32) {
    %c0_i32 = arith.constant 0 : i32
    %c0_i32_0 = arith.constant 0 : i32
    return %arg0, %c0_i32 : i32, i32
  }
  func.func @transform_3(%arg0: i32) -> (i32, i32, i32) {
    %c0_i32 = arith.constant 0 : i32
    %c0_i32_0 = arith.constant 0 : i32
    %c0_i32_1 = arith.constant 0 : i32
    return %arg0, %c0_i32, %c0_i32_0 : i32, i32, i32
  }
}

module attributes {stable_mosaic.version = 11 : i64} {
  func.func @_affine_kernel(%arg0: i32, %arg1: memref<16x512xbf16, #tpu.memory_space<vmem>>, %arg2: memref<1x512xf32, #tpu.memory_space<vmem>>, %arg3: memref<1x512xf32, #tpu.memory_space<vmem>>, %arg4: memref<16x512xbf16, #tpu.memory_space<vmem>>) attributes {dimension_semantics = [#tpu.dimension_semantics<parallel>], iteration_bounds = array<i64: 2>, scalar_prefetch = 0 : i64, scratch_operands = 0 : i64, tpu.core_type = #tpu.core_type<tc>, window_params = [{transform_indices = @transform_0, window_bounds = array<i64: 16, 512>}, {pipeline_mode = #tpu.pipeline_mode<synchronous>, transform_indices = @transform_1, window_bounds = array<i64: 1, 512>}, {pipeline_mode = #tpu.pipeline_mode<synchronous>, transform_indices = @transform_2, window_bounds = array<i64: 1, 512>}, {transform_indices = @transform_3, window_bounds = array<i64: 16, 512>}]} {
    %c0 = arith.constant 0 : index
    %c0_0 = arith.constant 0 : index
    %0 = vector.load %arg1[%c0, %c0_0] : memref<16x512xbf16, #tpu.memory_space<vmem>>, vector<16x512xbf16>
    %1 = arith.extf %0 : vector<16x512xbf16> to vector<16x512xf32>
    %c0_1 = arith.constant 0 : index
    %c0_2 = arith.constant 0 : index
    %2 = vector.load %arg2[%c0_1, %c0_2] : memref<1x512xf32, #tpu.memory_space<vmem>>, vector<1x512xf32>
    %3 = vector.broadcast %2 : vector<1x512xf32> to vector<16x512xf32>
    %4 = arith.mulf %1, %3 : vector<16x512xf32>
    %c0_3 = arith.constant 0 : index
    %c0_4 = arith.constant 0 : index
    %5 = vector.load %arg3[%c0_3, %c0_4] : memref<1x512xf32, #tpu.memory_space<vmem>>, vector<1x512xf32>
    %6 = vector.broadcast %5 : vector<1x512xf32> to vector<16x512xf32>
    %7 = arith.addf %4, %6 : vector<16x512xf32>
    %cst = arith.constant 0.000000e+00 : f32
    %8 = vector.broadcast %cst : f32 to vector<16x512xf32>
    %9 = arith.maximumf %7, %8 : vector<16x512xf32>
    %10 = arith.truncf %9 : vector<16x512xf32> to vector<16x512xbf16>
    %c0_5 = arith.constant 0 : index
    %c0_6 = arith.constant 0 : index
    %11 = vector.load %arg4[%c0_5, %c0_6] : memref<16x512xbf16, #tpu.memory_space<vmem>>, vector<16x512xbf16>
    tpu.vector_store %arg4[%c0_5, %c0_6], %10 {strides = array<i32>} : memref<16x512xbf16, #tpu.memory_space<vmem>>, vector<16x512xbf16>,
    return
  }
  func.func @transform_0(%arg0: i32) -> (i32, i32) {
    %c0_i32 = arith.constant 0 : i32
    %c0_i32_0 = arith.constant 0 : i32
    return %arg0, %c0_i32 : i32, i32
  }
  func.func @transform_1(%arg0: i32) -> (i32, i32) {
    %c0_i32 = arith.constant 0 : i32
    %c0_i32_0 = arith.constant 0 : i32
    %c0_i32_1 = arith.constant 0 : i32
    return %c0_i32, %c0_i32_0 : i32, i32
  }
  func.func @transform_2(%arg0: i32) -> (i32, i32) {
    %c0_i32 = arith.constant 0 : i32
    %c0_i32_0 = arith.constant 0 : i32
    %c0_i32_1 = arith.constant 0 : i32
    return %c0_i32, %c0_i32_0 : i32, i32
  }
  func.func @transform_3(%arg0: i32) -> (i32, i32) {
    %c0_i32 = arith.constant 0 : i32
    %c0_i32_0 = arith.constant 0 : i32
    return %arg0, %c0_i32 : i32, i32
  }
}

module attributes {stable_mosaic.version = 11 : i64} {
  func.func @_maxpool3x3s2_kernel(%arg0: i32, %arg1: memref<1x2x10x5x64xbf16, #tpu.memory_space<vmem>>, %arg2: memref<1x4x4x64xbf16, #tpu.memory_space<vmem>>) attributes {dimension_semantics = [#tpu.dimension_semantics<parallel>], iteration_bounds = array<i64: 4>, scalar_prefetch = 0 : i64, scratch_operands = 0 : i64, tpu.core_type = #tpu.core_type<tc>, window_params = [{transform_indices = @transform_0, window_bounds = array<i64: 1, 2, 10, 5, 64>}, {transform_indices = @transform_1, window_bounds = array<i64: 1, 4, 4, 64>}]} {
    %c0 = arith.constant 0 : index
    %c0_0 = arith.constant 0 : index
    %c0_1 = arith.constant 0 : index
    %c0_2 = arith.constant 0 : index
    %c0_3 = arith.constant 0 : index
    %0 = vector.load %arg1[%c0, %c0_0, %c0_1, %c0_2, %c0_3] : memref<1x2x10x5x64xbf16, #tpu.memory_space<vmem>>, vector<1x1x10x5x64xbf16>
    %1 = vector.shape_cast %0 : vector<1x1x10x5x64xbf16> to vector<10x5x64xbf16>
    %c0_4 = arith.constant 0 : index
    %c1 = arith.constant 1 : index
    %c0_5 = arith.constant 0 : index
    %c0_6 = arith.constant 0 : index
    %c0_7 = arith.constant 0 : index
    %2 = vector.load %arg1[%c0_4, %c1, %c0_5, %c0_6, %c0_7] : memref<1x2x10x5x64xbf16, #tpu.memory_space<vmem>>, vector<1x1x10x5x64xbf16>
    %3 = vector.shape_cast %2 : vector<1x1x10x5x64xbf16> to vector<10x5x64xbf16>
    %4 = vector.extract_strided_slice %1 {offsets = [0, 0, 0], sizes = [10, 4, 64], strides = [1, 1, 1]} : vector<10x5x64xbf16> to vector<10x4x64xbf16>
    %5 = vector.extract_strided_slice %3 {offsets = [0, 0, 0], sizes = [10, 4, 64], strides = [1, 1, 1]} : vector<10x5x64xbf16> to vector<10x4x64xbf16>
    %6 = arith.maximumf %4, %5 : vector<10x4x64xbf16>
    %7 = vector.extract_strided_slice %1 {offsets = [0, 1, 0], sizes = [10, 4, 64], strides = [1, 1, 1]} : vector<10x5x64xbf16> to vector<10x4x64xbf16>
    %8 = arith.maximumf %6, %7 : vector<10x4x64xbf16>
    %9 = vector.extract_strided_slice %8 {offsets = [0, 0, 0], sizes = [8, 4, 64], strides = [1, 1, 1]} : vector<10x4x64xbf16> to vector<8x4x64xbf16>
    %10 = vector.shape_cast %9 : vector<8x4x64xbf16> to vector<4x2x4x64xbf16>
    %11 = vector.extract_strided_slice %8 {offsets = [2, 0, 0], sizes = [8, 4, 64], strides = [1, 1, 1]} : vector<10x4x64xbf16> to vector<8x4x64xbf16>
    %12 = vector.shape_cast %11 : vector<8x4x64xbf16> to vector<4x2x4x64xbf16>
    %13 = vector.extract_strided_slice %10 {offsets = [0, 0, 0, 0], sizes = [4, 1, 4, 64], strides = [1, 1, 1, 1]} : vector<4x2x4x64xbf16> to vector<4x1x4x64xbf16>
    %14 = vector.shape_cast %13 : vector<4x1x4x64xbf16> to vector<4x4x64xbf16>
    %15 = vector.extract_strided_slice %10 {offsets = [0, 1, 0, 0], sizes = [4, 1, 4, 64], strides = [1, 1, 1, 1]} : vector<4x2x4x64xbf16> to vector<4x1x4x64xbf16>
    %16 = vector.shape_cast %15 : vector<4x1x4x64xbf16> to vector<4x4x64xbf16>
    %17 = arith.maximumf %14, %16 : vector<4x4x64xbf16>
    %18 = vector.extract_strided_slice %12 {offsets = [0, 0, 0, 0], sizes = [4, 1, 4, 64], strides = [1, 1, 1, 1]} : vector<4x2x4x64xbf16> to vector<4x1x4x64xbf16>
    %19 = vector.shape_cast %18 : vector<4x1x4x64xbf16> to vector<4x4x64xbf16>
    %20 = arith.maximumf %17, %19 : vector<4x4x64xbf16>
    %c0_8 = arith.constant 0 : index
    %c0_9 = arith.constant 0 : index
    %c0_10 = arith.constant 0 : index
    %c0_11 = arith.constant 0 : index
    %21 = vector.load %arg2[%c0_8, %c0_9, %c0_10, %c0_11] : memref<1x4x4x64xbf16, #tpu.memory_space<vmem>>, vector<1x4x4x64xbf16>
    %22 = vector.shape_cast %21 : vector<1x4x4x64xbf16> to vector<4x4x64xbf16>
    %23 = vector.shape_cast %20 : vector<4x4x64xbf16> to vector<1x4x4x64xbf16>
    tpu.vector_store %arg2[%c0_8, %c0_9, %c0_10, %c0_11], %23 {strides = array<i32>} : memref<1x4x4x64xbf16, #tpu.memory_space<vmem>>, vector<1x4x4x64xbf16>,
    return
  }
  func.func @transform_0(%arg0: i32) -> (i32, i32, i32, i32, i32) {
    %c0_i32 = arith.constant 0 : i32
    %c0_i32_0 = arith.constant 0 : i32
    %c0_i32_1 = arith.constant 0 : i32
    %c0_i32_2 = arith.constant 0 : i32
    %c0_i32_3 = arith.constant 0 : i32
    return %arg0, %c0_i32, %c0_i32_0, %c0_i32_1, %c0_i32_2 : i32, i32, i32, i32, i32
  }
  func.func @transform_1(%arg0: i32) -> (i32, i32, i32, i32) {
    %c0_i32 = arith.constant 0 : i32
    %c0_i32_0 = arith.constant 0 : i32
    %c0_i32_1 = arith.constant 0 : i32
    %c0_i32_2 = arith.constant 0 : i32
    return %arg0, %c0_i32, %c0_i32_0, %c0_i32_1 : i32, i32, i32, i32
  }
}

module attributes {stable_mosaic.version = 11 : i64} {
  func.func @_conv3x3_kernel(%arg0: i32, %arg1: memref<2x38x64xbf16, #tpu.memory_space<vmem>>, %arg2: memref<9x64x64xbf16, #tpu.memory_space<vmem>>, %arg3: memref<2x24x64xbf16, #tpu.memory_space<vmem>>, %arg4: memref<1x2x64xf32, #tpu.memory_space<vmem>>) attributes {dimension_semantics = [#tpu.dimension_semantics<parallel>], iteration_bounds = array<i64: 2>, scalar_prefetch = 0 : i64, scratch_operands = 0 : i64, tpu.core_type = #tpu.core_type<tc>, window_params = [{transform_indices = @transform_0, window_bounds = array<i64: 2, 38, 64>}, {pipeline_mode = #tpu.pipeline_mode<synchronous>, transform_indices = @transform_1, window_bounds = array<i64: 9, 64, 64>}, {transform_indices = @transform_2, window_bounds = array<i64: 2, 24, 64>}, {transform_indices = @transform_3, window_bounds = array<i64: 1, 2, 64>}]} {
    %0 = tpu.iota {dimensions = array<i32: 0>} : vector<24x1xi32>
    %c6_i32 = arith.constant 6 : i32
    %c0_i32 = arith.constant 0 : i32
    %1 = arith.cmpi eq, %c6_i32, %c0_i32 : i32
    %c1_i32 = arith.constant 1 : i32
    %2 = arith.select %1, %c1_i32, %c6_i32 : i32
    %3 = vector.broadcast %2 : i32 to vector<24x1xi32>
    %4 = arith.remsi %0, %3 : vector<24x1xi32>
    %c0_i32_0 = arith.constant 0 : i32
    %5 = vector.broadcast %c0_i32_0 : i32 to vector<24x1xi32>
    %6 = arith.cmpi ne, %4, %5 : vector<24x1xi32>
    %c0_i32_1 = arith.constant 0 : i32
    %7 = vector.broadcast %c0_i32_1 : i32 to vector<24x1xi32>
    %8 = arith.cmpi slt, %4, %7 : vector<24x1xi32>
    %c0_i32_2 = arith.constant 0 : i32
    %9 = arith.cmpi slt, %2, %c0_i32_2 : i32
    %10 = vector.broadcast %9 : i1 to vector<24x1xi1>
    %11 = vector.broadcast %10 : vector<24x1xi1> to vector<24x1xi1>
    %12 = arith.xori %8, %11 : vector<24x1xi1>
    %13 = arith.andi %12, %6 : vector<24x1xi1>
    %14 = vector.broadcast %2 : i32 to vector<24x1xi32>
    %15 = arith.addi %4, %14 : vector<24x1xi32>
    %16 = arith.select %13, %15, %4 : vector<24x1xi1>, vector<24x1xi32>
    %c4_i32 = arith.constant 4 : i32
    %17 = vector.broadcast %c4_i32 : i32 to vector<24x1xi32>
    %18 = arith.cmpi slt, %16, %17 : vector<24x1xi32>
    %19 = arith.extui %18 : vector<24x1xi1> to vector<24x1xi32>
    %20 = arith.sitofp %19 : vector<24x1xi32> to vector<24x1xf32>
    %c0 = arith.constant 0 : index
    %c0_3 = arith.constant 0 : index
    %c0_4 = arith.constant 0 : index
    %21 = vector.load %arg2[%c0, %c0_3, %c0_4] : memref<9x64x64xbf16, #tpu.memory_space<vmem>>, vector<9x64x64xbf16>
    %cst = arith.constant 0.000000e+00 : f32
    %22 = vector.broadcast %cst : f32 to vector<1x64xf32>
    %cst_5 = arith.constant 0.000000e+00 : f32
    %23 = vector.broadcast %cst_5 : f32 to vector<1x64xf32>
    %c0_6 = arith.constant 0 : index
    %c0_7 = arith.constant 0 : index
    %c0_8 = arith.constant 0 : index
    %24 = vector.load %arg1[%c0_6, %c0_7, %c0_8] : memref<2x38x64xbf16, #tpu.memory_space<vmem>>, vector<1x24x64xbf16>
    %25 = vector.shape_cast %24 : vector<1x24x64xbf16> to vector<24x64xbf16>
    %26 = vector.extract_strided_slice %21 {offsets = [0, 0, 0], sizes = [1, 64, 64], strides = [1, 1, 1]} : vector<9x64x64xbf16> to vector<1x64x64xbf16>
    %27 = vector.shape_cast %26 : vector<1x64x64xbf16> to vector<64x64xbf16>
    %cst_9 = arith.constant dense<0.000000e+00> : vector<24x64xf32>
    %28 = tpu.matmul %25, %27, %cst_9 {dimension_numbers = #tpu.dot_dimension_numbers<[1], [0], [0], [1], [0, 0, 1, 1], [], []>} : vector<24x64xbf16>, vector<64x64xbf16>, vector<24x64xf32> -> vector<24x64xf32>
    %c0_10 = arith.constant 0 : index
    %c1 = arith.constant 1 : index
    %c0_11 = arith.constant 0 : index
    %29 = vector.load %arg1[%c0_10, %c1, %c0_11] : memref<2x38x64xbf16, #tpu.memory_space<vmem>>, vector<1x24x64xbf16>
    %30 = vector.shape_cast %29 : vector<1x24x64xbf16> to vector<24x64xbf16>
    %31 = vector.extract_strided_slice %21 {offsets = [1, 0, 0], sizes = [1, 64, 64], strides = [1, 1, 1]} : vector<9x64x64xbf16> to vector<1x64x64xbf16>
    %32 = vector.shape_cast %31 : vector<1x64x64xbf16> to vector<64x64xbf16>
    %cst_12 = arith.constant dense<0.000000e+00> : vector<24x64xf32>
    %33 = tpu.matmul %30, %32, %cst_12 {dimension_numbers = #tpu.dot_dimension_numbers<[1], [0], [0], [1], [0, 0, 1, 1], [], []>} : vector<24x64xbf16>, vector<64x64xbf16>, vector<24x64xf32> -> vector<24x64xf32>
    %34 = arith.addf %28, %33 : vector<24x64xf32>
    %c0_13 = arith.constant 0 : index
    %c2 = arith.constant 2 : index
    %c0_14 = arith.constant 0 : index
    %35 = vector.load %arg1[%c0_13, %c2, %c0_14] : memref<2x38x64xbf16, #tpu.memory_space<vmem>>, vector<1x24x64xbf16>
    %36 = vector.shape_cast %35 : vector<1x24x64xbf16> to vector<24x64xbf16>
    %37 = vector.extract_strided_slice %21 {offsets = [2, 0, 0], sizes = [1, 64, 64], strides = [1, 1, 1]} : vector<9x64x64xbf16> to vector<1x64x64xbf16>
    %38 = vector.shape_cast %37 : vector<1x64x64xbf16> to vector<64x64xbf16>
    %cst_15 = arith.constant dense<0.000000e+00> : vector<24x64xf32>
    %39 = tpu.matmul %36, %38, %cst_15 {dimension_numbers = #tpu.dot_dimension_numbers<[1], [0], [0], [1], [0, 0, 1, 1], [], []>} : vector<24x64xbf16>, vector<64x64xbf16>, vector<24x64xf32> -> vector<24x64xf32>
    %40 = arith.addf %34, %39 : vector<24x64xf32>
    %c0_16 = arith.constant 0 : index
    %c6 = arith.constant 6 : index
    %c0_17 = arith.constant 0 : index
    %41 = vector.load %arg1[%c0_16, %c6, %c0_17] : memref<2x38x64xbf16, #tpu.memory_space<vmem>>, vector<1x24x64xbf16>
    %42 = vector.shape_cast %41 : vector<1x24x64xbf16> to vector<24x64xbf16>
    %43 = vector.extract_strided_slice %21 {offsets = [3, 0, 0], sizes = [1, 64, 64], strides = [1, 1, 1]} : vector<9x64x64xbf16> to vector<1x64x64xbf16>
    %44 = vector.shape_cast %43 : vector<1x64x64xbf16> to vector<64x64xbf16>
    %cst_18 = arith.constant dense<0.000000e+00> : vector<24x64xf32>
    %45 = tpu.matmul %42, %44, %cst_18 {dimension_numbers = #tpu.dot_dimension_numbers<[1], [0], [0], [1], [0, 0, 1, 1], [], []>} : vector<24x64xbf16>, vector<64x64xbf16>, vector<24x64xf32> -> vector<24x64xf32>
    %46 = arith.addf %40, %45 : vector<24x64xf32>
    %c0_19 = arith.constant 0 : index
    %c7 = arith.constant 7 : index
    %c0_20 = arith.constant 0 : index
    %47 = vector.load %arg1[%c0_19, %c7, %c0_20] : memref<2x38x64xbf16, #tpu.memory_space<vmem>>, vector<1x24x64xbf16>
    %48 = vector.shape_cast %47 : vector<1x24x64xbf16> to vector<24x64xbf16>
    %49 = vector.extract_strided_slice %21 {offsets = [4, 0, 0], sizes = [1, 64, 64], strides = [1, 1, 1]} : vector<9x64x64xbf16> to vector<1x64x64xbf16>
    %50 = vector.shape_cast %49 : vector<1x64x64xbf16> to vector<64x64xbf16>
    %cst_21 = arith.constant dense<0.000000e+00> : vector<24x64xf32>
    %51 = tpu.matmul %48, %50, %cst_21 {dimension_numbers = #tpu.dot_dimension_numbers<[1], [0], [0], [1], [0, 0, 1, 1], [], []>} : vector<24x64xbf16>, vector<64x64xbf16>, vector<24x64xf32> -> vector<24x64xf32>
    %52 = arith.addf %46, %51 : vector<24x64xf32>
    %c0_22 = arith.constant 0 : index
    %c8 = arith.constant 8 : index
    %c0_23 = arith.constant 0 : index
    %53 = vector.load %arg1[%c0_22, %c8, %c0_23] : memref<2x38x64xbf16, #tpu.memory_space<vmem>>, vector<1x24x64xbf16>
    %54 = vector.shape_cast %53 : vector<1x24x64xbf16> to vector<24x64xbf16>
    %55 = vector.extract_strided_slice %21 {offsets = [5, 0, 0], sizes = [1, 64, 64], strides = [1, 1, 1]} : vector<9x64x64xbf16> to vector<1x64x64xbf16>
    %56 = vector.shape_cast %55 : vector<1x64x64xbf16> to vector<64x64xbf16>
    %cst_24 = arith.constant dense<0.000000e+00> : vector<24x64xf32>
    %57 = tpu.matmul %54, %56, %cst_24 {dimension_numbers = #tpu.dot_dimension_numbers<[1], [0], [0], [1], [0, 0, 1, 1], [], []>} : vector<24x64xbf16>, vector<64x64xbf16>, vector<24x64xf32> -> vector<24x64xf32>
    %58 = arith.addf %52, %57 : vector<24x64xf32>
    %c0_25 = arith.constant 0 : index
    %c12 = arith.constant 12 : index
    %c0_26 = arith.constant 0 : index
    %59 = vector.load %arg1[%c0_25, %c12, %c0_26] : memref<2x38x64xbf16, #tpu.memory_space<vmem>>, vector<1x24x64xbf16>
    %60 = vector.shape_cast %59 : vector<1x24x64xbf16> to vector<24x64xbf16>
    %61 = vector.extract_strided_slice %21 {offsets = [6, 0, 0], sizes = [1, 64, 64], strides = [1, 1, 1]} : vector<9x64x64xbf16> to vector<1x64x64xbf16>
    %62 = vector.shape_cast %61 : vector<1x64x64xbf16> to vector<64x64xbf16>
    %cst_27 = arith.constant dense<0.000000e+00> : vector<24x64xf32>
    %63 = tpu.matmul %60, %62, %cst_27 {dimension_numbers = #tpu.dot_dimension_numbers<[1], [0], [0], [1], [0, 0, 1, 1], [], []>} : vector<24x64xbf16>, vector<64x64xbf16>, vector<24x64xf32> -> vector<24x64xf32>
    %64 = arith.addf %58, %63 : vector<24x64xf32>
    %c0_28 = arith.constant 0 : index
    %c13 = arith.constant 13 : index
    %c0_29 = arith.constant 0 : index
    %65 = vector.load %arg1[%c0_28, %c13, %c0_29] : memref<2x38x64xbf16, #tpu.memory_space<vmem>>, vector<1x24x64xbf16>
    %66 = vector.shape_cast %65 : vector<1x24x64xbf16> to vector<24x64xbf16>
    %67 = vector.extract_strided_slice %21 {offsets = [7, 0, 0], sizes = [1, 64, 64], strides = [1, 1, 1]} : vector<9x64x64xbf16> to vector<1x64x64xbf16>
    %68 = vector.shape_cast %67 : vector<1x64x64xbf16> to vector<64x64xbf16>
    %cst_30 = arith.constant dense<0.000000e+00> : vector<24x64xf32>
    %69 = tpu.matmul %66, %68, %cst_30 {dimension_numbers = #tpu.dot_dimension_numbers<[1], [0], [0], [1], [0, 0, 1, 1], [], []>} : vector<24x64xbf16>, vector<64x64xbf16>, vector<24x64xf32> -> vector<24x64xf32>
    %70 = arith.addf %64, %69 : vector<24x64xf32>
    %c0_31 = arith.constant 0 : index
    %c14 = arith.constant 14 : index
    %c0_32 = arith.constant 0 : index
    %71 = vector.load %arg1[%c0_31, %c14, %c0_32] : memref<2x38x64xbf16, #tpu.memory_space<vmem>>, vector<1x24x64xbf16>
    %72 = vector.shape_cast %71 : vector<1x24x64xbf16> to vector<24x64xbf16>
    %73 = vector.extract_strided_slice %21 {offsets = [8, 0, 0], sizes = [1, 64, 64], strides = [1, 1, 1]} : vector<9x64x64xbf16> to vector<1x64x64xbf16>
    %74 = vector.shape_cast %73 : vector<1x64x64xbf16> to vector<64x64xbf16>
    %cst_33 = arith.constant dense<0.000000e+00> : vector<24x64xf32>
    %75 = tpu.matmul %72, %74, %cst_33 {dimension_numbers = #tpu.dot_dimension_numbers<[1], [0], [0], [1], [0, 0, 1, 1], [], []>} : vector<24x64xbf16>, vector<64x64xbf16>, vector<24x64xf32> -> vector<24x64xf32>
    %76 = arith.addf %70, %75 : vector<24x64xf32>
    %77 = arith.truncf %76 : vector<24x64xf32> to vector<24x64xbf16>
    %c0_34 = arith.constant 0 : index
    %c0_35 = arith.constant 0 : index
    %c0_36 = arith.constant 0 : index
    %78 = vector.load %arg3[%c0_34, %c0_35, %c0_36] : memref<2x24x64xbf16, #tpu.memory_space<vmem>>, vector<1x24x64xbf16>
    %79 = vector.shape_cast %78 : vector<1x24x64xbf16> to vector<24x64xbf16>
    %80 = vector.shape_cast %77 : vector<24x64xbf16> to vector<1x24x64xbf16>
    tpu.vector_store %arg3[%c0_34, %c0_35, %c0_36], %80 {strides = array<i32>} : memref<2x24x64xbf16, #tpu.memory_space<vmem>>, vector<1x24x64xbf16>,
    %81 = vector.broadcast %20 : vector<24x1xf32> to vector<24x64xf32>
    %82 = arith.mulf %76, %81 : vector<24x64xf32>
    %cst_37 = arith.constant dense<0.000000e+00> : vector<64xf32>
    %83 = vector.multi_reduction <add>, %82, %cst_37 [0] : vector<24x64xf32> to vector<64xf32>
    %84 = vector.shape_cast %83 : vector<64xf32> to vector<1x64xf32>
    %85 = arith.addf %22, %84 : vector<1x64xf32>
    %86 = arith.mulf %82, %82 : vector<24x64xf32>
    %cst_38 = arith.constant dense<0.000000e+00> : vector<64xf32>
    %87 = vector.multi_reduction <add>, %86, %cst_38 [0] : vector<24x64xf32> to vector<64xf32>
    %88 = vector.shape_cast %87 : vector<64xf32> to vector<1x64xf32>
    %89 = arith.addf %23, %88 : vector<1x64xf32>
    %c1_39 = arith.constant 1 : index
    %c0_40 = arith.constant 0 : index
    %c0_41 = arith.constant 0 : index
    %90 = vector.load %arg1[%c1_39, %c0_40, %c0_41] : memref<2x38x64xbf16, #tpu.memory_space<vmem>>, vector<1x24x64xbf16>
    %91 = vector.shape_cast %90 : vector<1x24x64xbf16> to vector<24x64xbf16>
    %92 = vector.extract_strided_slice %21 {offsets = [0, 0, 0], sizes = [1, 64, 64], strides = [1, 1, 1]} : vector<9x64x64xbf16> to vector<1x64x64xbf16>
    %93 = vector.shape_cast %92 : vector<1x64x64xbf16> to vector<64x64xbf16>
    %cst_42 = arith.constant dense<0.000000e+00> : vector<24x64xf32>
    %94 = tpu.matmul %91, %93, %cst_42 {dimension_numbers = #tpu.dot_dimension_numbers<[1], [0], [0], [1], [0, 0, 1, 1], [], []>} : vector<24x64xbf16>, vector<64x64xbf16>, vector<24x64xf32> -> vector<24x64xf32>
    %c1_43 = arith.constant 1 : index
    %c1_44 = arith.constant 1 : index
    %c0_45 = arith.constant 0 : index
    %95 = vector.load %arg1[%c1_43, %c1_44, %c0_45] : memref<2x38x64xbf16, #tpu.memory_space<vmem>>, vector<1x24x64xbf16>
    %96 = vector.shape_cast %95 : vector<1x24x64xbf16> to vector<24x64xbf16>
    %97 = vector.extract_strided_slice %21 {offsets = [1, 0, 0], sizes = [1, 64, 64], strides = [1, 1, 1]} : vector<9x64x64xbf16> to vector<1x64x64xbf16>
    %98 = vector.shape_cast %97 : vector<1x64x64xbf16> to vector<64x64xbf16>
    %cst_46 = arith.constant dense<0.000000e+00> : vector<24x64xf32>
    %99 = tpu.matmul %96, %98, %cst_46 {dimension_numbers = #tpu.dot_dimension_numbers<[1], [0], [0], [1], [0, 0, 1, 1], [], []>} : vector<24x64xbf16>, vector<64x64xbf16>, vector<24x64xf32> -> vector<24x64xf32>
    %100 = arith.addf %94, %99 : vector<24x64xf32>
    %c1_47 = arith.constant 1 : index
    %c2_48 = arith.constant 2 : index
    %c0_49 = arith.constant 0 : index
    %101 = vector.load %arg1[%c1_47, %c2_48, %c0_49] : memref<2x38x64xbf16, #tpu.memory_space<vmem>>, vector<1x24x64xbf16>
    %102 = vector.shape_cast %101 : vector<1x24x64xbf16> to vector<24x64xbf16>
    %103 = vector.extract_strided_slice %21 {offsets = [2, 0, 0], sizes = [1, 64, 64], strides = [1, 1, 1]} : vector<9x64x64xbf16> to vector<1x64x64xbf16>
    %104 = vector.shape_cast %103 : vector<1x64x64xbf16> to vector<64x64xbf16>
    %cst_50 = arith.constant dense<0.000000e+00> : vector<24x64xf32>
    %105 = tpu.matmul %102, %104, %cst_50 {dimension_numbers = #tpu.dot_dimension_numbers<[1], [0], [0], [1], [0, 0, 1, 1], [], []>} : vector<24x64xbf16>, vector<64x64xbf16>, vector<24x64xf32> -> vector<24x64xf32>
    %106 = arith.addf %100, %105 : vector<24x64xf32>
    %c1_51 = arith.constant 1 : index
    %c6_52 = arith.constant 6 : index
    %c0_53 = arith.constant 0 : index
    %107 = vector.load %arg1[%c1_51, %c6_52, %c0_53] : memref<2x38x64xbf16, #tpu.memory_space<vmem>>, vector<1x24x64xbf16>
    %108 = vector.shape_cast %107 : vector<1x24x64xbf16> to vector<24x64xbf16>
    %109 = vector.extract_strided_slice %21 {offsets = [3, 0, 0], sizes = [1, 64, 64], strides = [1, 1, 1]} : vector<9x64x64xbf16> to vector<1x64x64xbf16>
    %110 = vector.shape_cast %109 : vector<1x64x64xbf16> to vector<64x64xbf16>
    %cst_54 = arith.constant dense<0.000000e+00> : vector<24x64xf32>
    %111 = tpu.matmul %108, %110, %cst_54 {dimension_numbers = #tpu.dot_dimension_numbers<[1], [0], [0], [1], [0, 0, 1, 1], [], []>} : vector<24x64xbf16>, vector<64x64xbf16>, vector<24x64xf32> -> vector<24x64xf32>
    %112 = arith.addf %106, %111 : vector<24x64xf32>
    %c1_55 = arith.constant 1 : index
    %c7_56 = arith.constant 7 : index
    %c0_57 = arith.constant 0 : index
    %113 = vector.load %arg1[%c1_55, %c7_56, %c0_57] : memref<2x38x64xbf16, #tpu.memory_space<vmem>>, vector<1x24x64xbf16>
    %114 = vector.shape_cast %113 : vector<1x24x64xbf16> to vector<24x64xbf16>
    %115 = vector.extract_strided_slice %21 {offsets = [4, 0, 0], sizes = [1, 64, 64], strides = [1, 1, 1]} : vector<9x64x64xbf16> to vector<1x64x64xbf16>
    %116 = vector.shape_cast %115 : vector<1x64x64xbf16> to vector<64x64xbf16>
    %cst_58 = arith.constant dense<0.000000e+00> : vector<24x64xf32>
    %117 = tpu.matmul %114, %116, %cst_58 {dimension_numbers = #tpu.dot_dimension_numbers<[1], [0], [0], [1], [0, 0, 1, 1], [], []>} : vector<24x64xbf16>, vector<64x64xbf16>, vector<24x64xf32> -> vector<24x64xf32>
    %118 = arith.addf %112, %117 : vector<24x64xf32>
    %c1_59 = arith.constant 1 : index
    %c8_60 = arith.constant 8 : index
    %c0_61 = arith.constant 0 : index
    %119 = vector.load %arg1[%c1_59, %c8_60, %c0_61] : memref<2x38x64xbf16, #tpu.memory_space<vmem>>, vector<1x24x64xbf16>
    %120 = vector.shape_cast %119 : vector<1x24x64xbf16> to vector<24x64xbf16>
    %121 = vector.extract_strided_slice %21 {offsets = [5, 0, 0], sizes = [1, 64, 64], strides = [1, 1, 1]} : vector<9x64x64xbf16> to vector<1x64x64xbf16>
    %122 = vector.shape_cast %121 : vector<1x64x64xbf16> to vector<64x64xbf16>
    %cst_62 = arith.constant dense<0.000000e+00> : vector<24x64xf32>
    %123 = tpu.matmul %120, %122, %cst_62 {dimension_numbers = #tpu.dot_dimension_numbers<[1], [0], [0], [1], [0, 0, 1, 1], [], []>} : vector<24x64xbf16>, vector<64x64xbf16>, vector<24x64xf32> -> vector<24x64xf32>
    %124 = arith.addf %118, %123 : vector<24x64xf32>
    %c1_63 = arith.constant 1 : index
    %c12_64 = arith.constant 12 : index
    %c0_65 = arith.constant 0 : index
    %125 = vector.load %arg1[%c1_63, %c12_64, %c0_65] : memref<2x38x64xbf16, #tpu.memory_space<vmem>>, vector<1x24x64xbf16>
    %126 = vector.shape_cast %125 : vector<1x24x64xbf16> to vector<24x64xbf16>
    %127 = vector.extract_strided_slice %21 {offsets = [6, 0, 0], sizes = [1, 64, 64], strides = [1, 1, 1]} : vector<9x64x64xbf16> to vector<1x64x64xbf16>
    %128 = vector.shape_cast %127 : vector<1x64x64xbf16> to vector<64x64xbf16>
    %cst_66 = arith.constant dense<0.000000e+00> : vector<24x64xf32>
    %129 = tpu.matmul %126, %128, %cst_66 {dimension_numbers = #tpu.dot_dimension_numbers<[1], [0], [0], [1], [0, 0, 1, 1], [], []>} : vector<24x64xbf16>, vector<64x64xbf16>, vector<24x64xf32> -> vector<24x64xf32>
    %130 = arith.addf %124, %129 : vector<24x64xf32>
    %c1_67 = arith.constant 1 : index
    %c13_68 = arith.constant 13 : index
    %c0_69 = arith.constant 0 : index
    %131 = vector.load %arg1[%c1_67, %c13_68, %c0_69] : memref<2x38x64xbf16, #tpu.memory_space<vmem>>, vector<1x24x64xbf16>
    %132 = vector.shape_cast %131 : vector<1x24x64xbf16> to vector<24x64xbf16>
    %133 = vector.extract_strided_slice %21 {offsets = [7, 0, 0], sizes = [1, 64, 64], strides = [1, 1, 1]} : vector<9x64x64xbf16> to vector<1x64x64xbf16>
    %134 = vector.shape_cast %133 : vector<1x64x64xbf16> to vector<64x64xbf16>
    %cst_70 = arith.constant dense<0.000000e+00> : vector<24x64xf32>
    %135 = tpu.matmul %132, %134, %cst_70 {dimension_numbers = #tpu.dot_dimension_numbers<[1], [0], [0], [1], [0, 0, 1, 1], [], []>} : vector<24x64xbf16>, vector<64x64xbf16>, vector<24x64xf32> -> vector<24x64xf32>
    %136 = arith.addf %130, %135 : vector<24x64xf32>
    %c1_71 = arith.constant 1 : index
    %c14_72 = arith.constant 14 : index
    %c0_73 = arith.constant 0 : index
    %137 = vector.load %arg1[%c1_71, %c14_72, %c0_73] : memref<2x38x64xbf16, #tpu.memory_space<vmem>>, vector<1x24x64xbf16>
    %138 = vector.shape_cast %137 : vector<1x24x64xbf16> to vector<24x64xbf16>
    %139 = vector.extract_strided_slice %21 {offsets = [8, 0, 0], sizes = [1, 64, 64], strides = [1, 1, 1]} : vector<9x64x64xbf16> to vector<1x64x64xbf16>
    %140 = vector.shape_cast %139 : vector<1x64x64xbf16> to vector<64x64xbf16>
    %cst_74 = arith.constant dense<0.000000e+00> : vector<24x64xf32>
    %141 = tpu.matmul %138, %140, %cst_74 {dimension_numbers = #tpu.dot_dimension_numbers<[1], [0], [0], [1], [0, 0, 1, 1], [], []>} : vector<24x64xbf16>, vector<64x64xbf16>, vector<24x64xf32> -> vector<24x64xf32>
    %142 = arith.addf %136, %141 : vector<24x64xf32>
    %143 = arith.truncf %142 : vector<24x64xf32> to vector<24x64xbf16>
    %c1_75 = arith.constant 1 : index
    %c0_76 = arith.constant 0 : index
    %c0_77 = arith.constant 0 : index
    %144 = vector.load %arg3[%c1_75, %c0_76, %c0_77] : memref<2x24x64xbf16, #tpu.memory_space<vmem>>, vector<1x24x64xbf16>
    %145 = vector.shape_cast %144 : vector<1x24x64xbf16> to vector<24x64xbf16>
    %146 = vector.shape_cast %143 : vector<24x64xbf16> to vector<1x24x64xbf16>
    tpu.vector_store %arg3[%c1_75, %c0_76, %c0_77], %146 {strides = array<i32>} : memref<2x24x64xbf16, #tpu.memory_space<vmem>>, vector<1x24x64xbf16>,
    %147 = vector.broadcast %20 : vector<24x1xf32> to vector<24x64xf32>
    %148 = arith.mulf %142, %147 : vector<24x64xf32>
    %cst_78 = arith.constant dense<0.000000e+00> : vector<64xf32>
    %149 = vector.multi_reduction <add>, %148, %cst_78 [0] : vector<24x64xf32> to vector<64xf32>
    %150 = vector.shape_cast %149 : vector<64xf32> to vector<1x64xf32>
    %151 = arith.addf %85, %150 : vector<1x64xf32>
    %152 = arith.mulf %148, %148 : vector<24x64xf32>
    %cst_79 = arith.constant dense<0.000000e+00> : vector<64xf32>
    %153 = vector.multi_reduction <add>, %152, %cst_79 [0] : vector<24x64xf32> to vector<64xf32>
    %154 = vector.shape_cast %153 : vector<64xf32> to vector<1x64xf32>
    %155 = arith.addf %89, %154 : vector<1x64xf32>
    %156 = tpu.concatenate %151, %155 in 0 : vector<1x64xf32>, vector<1x64xf32> -> vector<2x64xf32>
    %c0_80 = arith.constant 0 : index
    %c0_81 = arith.constant 0 : index
    %c0_82 = arith.constant 0 : index
    %157 = vector.load %arg4[%c0_80, %c0_81, %c0_82] : memref<1x2x64xf32, #tpu.memory_space<vmem>>, vector<1x2x64xf32>
    %158 = vector.shape_cast %157 : vector<1x2x64xf32> to vector<2x64xf32>
    %159 = vector.shape_cast %156 : vector<2x64xf32> to vector<1x2x64xf32>
    tpu.vector_store %arg4[%c0_80, %c0_81, %c0_82], %159 {strides = array<i32>} : memref<1x2x64xf32, #tpu.memory_space<vmem>>, vector<1x2x64xf32>,
    return
  }
  func.func @transform_0(%arg0: i32) -> (i32, i32, i32) {
    %c0_i32 = arith.constant 0 : i32
    %c0_i32_0 = arith.constant 0 : i32
    %c0_i32_1 = arith.constant 0 : i32
    return %arg0, %c0_i32, %c0_i32_0 : i32, i32, i32
  }
  func.func @transform_1(%arg0: i32) -> (i32, i32, i32) {
    %c0_i32 = arith.constant 0 : i32
    %c0_i32_0 = arith.constant 0 : i32
    %c0_i32_1 = arith.constant 0 : i32
    %c0_i32_2 = arith.constant 0 : i32
    return %c0_i32, %c0_i32_0, %c0_i32_1 : i32, i32, i32
  }
  func.func @transform_2(%arg0: i32) -> (i32, i32, i32) {
    %c0_i32 = arith.constant 0 : i32
    %c0_i32_0 = arith.constant 0 : i32
    %c0_i32_1 = arith.constant 0 : i32
    return %arg0, %c0_i32, %c0_i32_0 : i32, i32, i32
  }
  func.func @transform_3(%arg0: i32) -> (i32, i32, i32) {
    %c0_i32 = arith.constant 0 : i32
    %c0_i32_0 = arith.constant 0 : i32
    %c0_i32_1 = arith.constant 0 : i32
    return %arg0, %c0_i32, %c0_i32_0 : i32, i32, i32
  }
}

module attributes {stable_mosaic.version = 11 : i64} {
  func.func @_affine_kernel(%arg0: i32, %arg1: memref<8x512xbf16, #tpu.memory_space<vmem>>, %arg2: memref<1x512xf32, #tpu.memory_space<vmem>>, %arg3: memref<1x512xf32, #tpu.memory_space<vmem>>, %arg4: memref<8x512xbf16, #tpu.memory_space<vmem>>) attributes {dimension_semantics = [#tpu.dimension_semantics<parallel>], iteration_bounds = array<i64: 1>, scalar_prefetch = 0 : i64, scratch_operands = 0 : i64, tpu.core_type = #tpu.core_type<tc>, window_params = [{transform_indices = @transform_0, window_bounds = array<i64: 8, 512>}, {pipeline_mode = #tpu.pipeline_mode<synchronous>, transform_indices = @transform_1, window_bounds = array<i64: 1, 512>}, {pipeline_mode = #tpu.pipeline_mode<synchronous>, transform_indices = @transform_2, window_bounds = array<i64: 1, 512>}, {transform_indices = @transform_3, window_bounds = array<i64: 8, 512>}]} {
    %c0 = arith.constant 0 : index
    %c0_0 = arith.constant 0 : index
    %0 = vector.load %arg1[%c0, %c0_0] : memref<8x512xbf16, #tpu.memory_space<vmem>>, vector<8x512xbf16>
    %1 = arith.extf %0 : vector<8x512xbf16> to vector<8x512xf32>
    %c0_1 = arith.constant 0 : index
    %c0_2 = arith.constant 0 : index
    %2 = vector.load %arg2[%c0_1, %c0_2] : memref<1x512xf32, #tpu.memory_space<vmem>>, vector<1x512xf32>
    %3 = vector.broadcast %2 : vector<1x512xf32> to vector<8x512xf32>
    %4 = arith.mulf %1, %3 : vector<8x512xf32>
    %c0_3 = arith.constant 0 : index
    %c0_4 = arith.constant 0 : index
    %5 = vector.load %arg3[%c0_3, %c0_4] : memref<1x512xf32, #tpu.memory_space<vmem>>, vector<1x512xf32>
    %6 = vector.broadcast %5 : vector<1x512xf32> to vector<8x512xf32>
    %7 = arith.addf %4, %6 : vector<8x512xf32>
    %cst = arith.constant 0.000000e+00 : f32
    %8 = vector.broadcast %cst : f32 to vector<8x512xf32>
    %9 = arith.maximumf %7, %8 : vector<8x512xf32>
    %10 = arith.truncf %9 : vector<8x512xf32> to vector<8x512xbf16>
    %c0_5 = arith.constant 0 : index
    %c0_6 = arith.constant 0 : index
    %11 = vector.load %arg4[%c0_5, %c0_6] : memref<8x512xbf16, #tpu.memory_space<vmem>>, vector<8x512xbf16>
    tpu.vector_store %arg4[%c0_5, %c0_6], %10 {strides = array<i32>} : memref<8x512xbf16, #tpu.memory_space<vmem>>, vector<8x512xbf16>,
    return
  }
  func.func @transform_0(%arg0: i32) -> (i32, i32) {
    %c0_i32 = arith.constant 0 : i32
    %c0_i32_0 = arith.constant 0 : i32
    return %arg0, %c0_i32 : i32, i32
  }
  func.func @transform_1(%arg0: i32) -> (i32, i32) {
    %c0_i32 = arith.constant 0 : i32
    %c0_i32_0 = arith.constant 0 : i32
    %c0_i32_1 = arith.constant 0 : i32
    return %c0_i32, %c0_i32_0 : i32, i32
  }
  func.func @transform_2(%arg0: i32) -> (i32, i32) {
    %c0_i32 = arith.constant 0 : i32
    %c0_i32_0 = arith.constant 0 : i32
    %c0_i32_1 = arith.constant 0 : i32
    return %c0_i32, %c0_i32_0 : i32, i32
  }
  func.func @transform_3(%arg0: i32) -> (i32, i32) {
    %c0_i32 = arith.constant 0 : i32
    %c0_i32_0 = arith.constant 0 : i32
    return %arg0, %c0_i32 : i32, i32
  }
}

module attributes {stable_mosaic.version = 11 : i64} {
  func.func @_affine_kernel(%arg0: i32, %arg1: memref<8x512xbf16, #tpu.memory_space<vmem>>, %arg2: memref<1x512xf32, #tpu.memory_space<vmem>>, %arg3: memref<1x512xf32, #tpu.memory_space<vmem>>, %arg4: memref<8x512xbf16, #tpu.memory_space<vmem>>, %arg5: memref<1x512xf32, #tpu.memory_space<vmem>>, %arg6: memref<1x512xf32, #tpu.memory_space<vmem>>, %arg7: memref<8x512xbf16, #tpu.memory_space<vmem>>) attributes {dimension_semantics = [#tpu.dimension_semantics<parallel>], iteration_bounds = array<i64: 1>, scalar_prefetch = 0 : i64, scratch_operands = 0 : i64, tpu.core_type = #tpu.core_type<tc>, window_params = [{transform_indices = @transform_0, window_bounds = array<i64: 8, 512>}, {pipeline_mode = #tpu.pipeline_mode<synchronous>, transform_indices = @transform_1, window_bounds = array<i64: 1, 512>}, {pipeline_mode = #tpu.pipeline_mode<synchronous>, transform_indices = @transform_2, window_bounds = array<i64: 1, 512>}, {transform_indices = @transform_3, window_bounds = array<i64: 8, 512>}, {pipeline_mode = #tpu.pipeline_mode<synchronous>, transform_indices = @transform_4, window_bounds = array<i64: 1, 512>}, {pipeline_mode = #tpu.pipeline_mode<synchronous>, transform_indices = @transform_5, window_bounds = array<i64: 1, 512>}, {transform_indices = @transform_6, window_bounds = array<i64: 8, 512>}]} {
    %c0 = arith.constant 0 : index
    %c0_0 = arith.constant 0 : index
    %0 = vector.load %arg1[%c0, %c0_0] : memref<8x512xbf16, #tpu.memory_space<vmem>>, vector<8x512xbf16>
    %1 = arith.extf %0 : vector<8x512xbf16> to vector<8x512xf32>
    %c0_1 = arith.constant 0 : index
    %c0_2 = arith.constant 0 : index
    %2 = vector.load %arg2[%c0_1, %c0_2] : memref<1x512xf32, #tpu.memory_space<vmem>>, vector<1x512xf32>
    %3 = vector.broadcast %2 : vector<1x512xf32> to vector<8x512xf32>
    %4 = arith.mulf %1, %3 : vector<8x512xf32>
    %c0_3 = arith.constant 0 : index
    %c0_4 = arith.constant 0 : index
    %5 = vector.load %arg3[%c0_3, %c0_4] : memref<1x512xf32, #tpu.memory_space<vmem>>, vector<1x512xf32>
    %6 = vector.broadcast %5 : vector<1x512xf32> to vector<8x512xf32>
    %7 = arith.addf %4, %6 : vector<8x512xf32>
    %c0_5 = arith.constant 0 : index
    %c0_6 = arith.constant 0 : index
    %8 = vector.load %arg4[%c0_5, %c0_6] : memref<8x512xbf16, #tpu.memory_space<vmem>>, vector<8x512xbf16>
    %9 = arith.extf %8 : vector<8x512xbf16> to vector<8x512xf32>
    %10 = arith.addf %7, %9 : vector<8x512xf32>
    %cst = arith.constant 0.000000e+00 : f32
    %11 = vector.broadcast %cst : f32 to vector<8x512xf32>
    %12 = arith.maximumf %10, %11 : vector<8x512xf32>
    %c0_7 = arith.constant 0 : index
    %c0_8 = arith.constant 0 : index
    %13 = vector.load %arg5[%c0_7, %c0_8] : memref<1x512xf32, #tpu.memory_space<vmem>>, vector<1x512xf32>
    %14 = vector.broadcast %13 : vector<1x512xf32> to vector<8x512xf32>
    %15 = arith.mulf %12, %14 : vector<8x512xf32>
    %c0_9 = arith.constant 0 : index
    %c0_10 = arith.constant 0 : index
    %16 = vector.load %arg6[%c0_9, %c0_10] : memref<1x512xf32, #tpu.memory_space<vmem>>, vector<1x512xf32>
    %17 = vector.broadcast %16 : vector<1x512xf32> to vector<8x512xf32>
    %18 = arith.addf %15, %17 : vector<8x512xf32>
    %19 = arith.truncf %18 : vector<8x512xf32> to vector<8x512xbf16>
    %c0_11 = arith.constant 0 : index
    %c0_12 = arith.constant 0 : index
    %20 = vector.load %arg7[%c0_11, %c0_12] : memref<8x512xbf16, #tpu.memory_space<vmem>>, vector<8x512xbf16>
    tpu.vector_store %arg7[%c0_11, %c0_12], %19 {strides = array<i32>} : memref<8x512xbf16, #tpu.memory_space<vmem>>, vector<8x512xbf16>,
    return
  }
  func.func @transform_0(%arg0: i32) -> (i32, i32) {
    %c0_i32 = arith.constant 0 : i32
    %c0_i32_0 = arith.constant 0 : i32
    return %arg0, %c0_i32 : i32, i32
  }
  func.func @transform_1(%arg0: i32) -> (i32, i32) {
    %c0_i32 = arith.constant 0 : i32
    %c0_i32_0 = arith.constant 0 : i32
    %c0_i32_1 = arith.constant 0 : i32
    return %c0_i32, %c0_i32_0 : i32, i32
  }
  func.func @transform_2(%arg0: i32) -> (i32, i32) {
    %c0_i32 = arith.constant 0 : i32
    %c0_i32_0 = arith.constant 0 : i32
    %c0_i32_1 = arith.constant 0 : i32
    return %c0_i32, %c0_i32_0 : i32, i32
  }
  func.func @transform_3(%arg0: i32) -> (i32, i32) {
    %c0_i32 = arith.constant 0 : i32
    %c0_i32_0 = arith.constant 0 : i32
    return %arg0, %c0_i32 : i32, i32
  }
  func.func @transform_4(%arg0: i32) -> (i32, i32) {
    %c0_i32 = arith.constant 0 : i32
    %c0_i32_0 = arith.constant 0 : i32
    %c0_i32_1 = arith.constant 0 : i32
    return %c0_i32, %c0_i32_0 : i32, i32
  }
  func.func @transform_5(%arg0: i32) -> (i32, i32) {
    %c0_i32 = arith.constant 0 : i32
    %c0_i32_0 = arith.constant 0 : i32
    %c0_i32_1 = arith.constant 0 : i32
    return %c0_i32, %c0_i32_0 : i32, i32
  }
  func.func @transform_6(%arg0: i32) -> (i32, i32) {
    %c0_i32 = arith.constant 0 : i32
    %c0_i32_0 = arith.constant 0 : i32
    return %arg0, %c0_i32 : i32, i32
  }
}

module attributes {stable_mosaic.version = 11 : i64} {
  func.func @_affine_kernel(%arg0: i32, %arg1: memref<8x512xbf16, #tpu.memory_space<vmem>>, %arg2: memref<1x512xf32, #tpu.memory_space<vmem>>, %arg3: memref<1x512xf32, #tpu.memory_space<vmem>>, %arg4: memref<8x512xbf16, #tpu.memory_space<vmem>>, %arg5: memref<8x512xbf16, #tpu.memory_space<vmem>>) attributes {dimension_semantics = [#tpu.dimension_semantics<parallel>], iteration_bounds = array<i64: 1>, scalar_prefetch = 0 : i64, scratch_operands = 0 : i64, tpu.core_type = #tpu.core_type<tc>, window_params = [{transform_indices = @transform_0, window_bounds = array<i64: 8, 512>}, {pipeline_mode = #tpu.pipeline_mode<synchronous>, transform_indices = @transform_1, window_bounds = array<i64: 1, 512>}, {pipeline_mode = #tpu.pipeline_mode<synchronous>, transform_indices = @transform_2, window_bounds = array<i64: 1, 512>}, {transform_indices = @transform_3, window_bounds = array<i64: 8, 512>}, {transform_indices = @transform_4, window_bounds = array<i64: 8, 512>}]} {
    %c0 = arith.constant 0 : index
    %c0_0 = arith.constant 0 : index
    %0 = vector.load %arg1[%c0, %c0_0] : memref<8x512xbf16, #tpu.memory_space<vmem>>, vector<8x512xbf16>
    %1 = arith.extf %0 : vector<8x512xbf16> to vector<8x512xf32>
    %c0_1 = arith.constant 0 : index
    %c0_2 = arith.constant 0 : index
    %2 = vector.load %arg2[%c0_1, %c0_2] : memref<1x512xf32, #tpu.memory_space<vmem>>, vector<1x512xf32>
    %3 = vector.broadcast %2 : vector<1x512xf32> to vector<8x512xf32>
    %4 = arith.mulf %1, %3 : vector<8x512xf32>
    %c0_3 = arith.constant 0 : index
    %c0_4 = arith.constant 0 : index
    %5 = vector.load %arg3[%c0_3, %c0_4] : memref<1x512xf32, #tpu.memory_space<vmem>>, vector<1x512xf32>
    %6 = vector.broadcast %5 : vector<1x512xf32> to vector<8x512xf32>
    %7 = arith.addf %4, %6 : vector<8x512xf32>
    %c0_5 = arith.constant 0 : index
    %c0_6 = arith.constant 0 : index
    %8 = vector.load %arg4[%c0_5, %c0_6] : memref<8x512xbf16, #tpu.memory_space<vmem>>, vector<8x512xbf16>
    %9 = arith.extf %8 : vector<8x512xbf16> to vector<8x512xf32>
    %10 = arith.addf %7, %9 : vector<8x512xf32>
    %cst = arith.constant 0.000000e+00 : f32
    %11 = vector.broadcast %cst : f32 to vector<8x512xf32>
    %12 = arith.maximumf %10, %11 : vector<8x512xf32>
    %13 = arith.truncf %12 : vector<8x512xf32> to vector<8x512xbf16>
    %c0_7 = arith.constant 0 : index
    %c0_8 = arith.constant 0 : index
    %14 = vector.load %arg5[%c0_7, %c0_8] : memref<8x512xbf16, #tpu.memory_space<vmem>>, vector<8x512xbf16>
    tpu.vector_store %arg5[%c0_7, %c0_8], %13 {strides = array<i32>} : memref<8x512xbf16, #tpu.memory_space<vmem>>, vector<8x512xbf16>,
    return
  }
  func.func @transform_0(%arg0: i32) -> (i32, i32) {
    %c0_i32 = arith.constant 0 : i32
    %c0_i32_0 = arith.constant 0 : i32
    return %arg0, %c0_i32 : i32, i32
  }
  func.func @transform_1(%arg0: i32) -> (i32, i32) {
    %c0_i32 = arith.constant 0 : i32
    %c0_i32_0 = arith.constant 0 : i32
    %c0_i32_1 = arith.constant 0 : i32
    return %c0_i32, %c0_i32_0 : i32, i32
  }
  func.func @transform_2(%arg0: i32) -> (i32, i32) {
    %c0_i32 = arith.constant 0 : i32
    %c0_i32_0 = arith.constant 0 : i32
    %c0_i32_1 = arith.constant 0 : i32
    return %c0_i32, %c0_i32_0 : i32, i32
  }
  func.func @transform_3(%arg0: i32) -> (i32, i32) {
    %c0_i32 = arith.constant 0 : i32
    %c0_i32_0 = arith.constant 0 : i32
    return %arg0, %c0_i32 : i32, i32
  }
  func.func @transform_4(%arg0: i32) -> (i32, i32) {
    %c0_i32 = arith.constant 0 : i32
    %c0_i32_0 = arith.constant 0 : i32
    return %arg0, %c0_i32 : i32, i32
  }
}

module attributes {stable_mosaic.version = 11 : i64} {
  func.func @_posembed_adapt_kernel(%arg0: i32, %arg1: memref<1x4x38x64xbf16, #tpu.memory_space<vmem>>, %arg2: memref<27x64xf32, #tpu.memory_space<vmem>>, %arg3: memref<1x64xf32, #tpu.memory_space<vmem>>, %arg4: memref<2x64x64xbf16, #tpu.memory_space<vmem>>, %arg5: memref<1x24x64xf32, #tpu.memory_space<vmem>>) attributes {dimension_semantics = [#tpu.dimension_semantics<parallel>], iteration_bounds = array<i64: 2>, scalar_prefetch = 0 : i64, scratch_operands = 0 : i64, tpu.core_type = #tpu.core_type<tc>, window_params = [{transform_indices = @transform_0, window_bounds = array<i64: 1, 4, 38, 64>}, {pipeline_mode = #tpu.pipeline_mode<synchronous>, transform_indices = @transform_1, window_bounds = array<i64: 27, 64>}, {pipeline_mode = #tpu.pipeline_mode<synchronous>, transform_indices = @transform_2, window_bounds = array<i64: 1, 64>}, {pipeline_mode = #tpu.pipeline_mode<synchronous>, transform_indices = @transform_3, window_bounds = array<i64: 2, 64, 64>}, {transform_indices = @transform_4, window_bounds = array<i64: 1, 24, 64>}]} {
    %c0 = arith.constant 0 : index
    %c0_0 = arith.constant 0 : index
    %0 = vector.load %arg2[%c0, %c0_0] : memref<27x64xf32, #tpu.memory_space<vmem>>, vector<27x64xf32>
    %c0_1 = arith.constant 0 : index
    %c0_2 = arith.constant 0 : index
    %1 = vector.load %arg3[%c0_1, %c0_2] : memref<1x64xf32, #tpu.memory_space<vmem>>, vector<1x64xf32>
    %cst = arith.constant 0.000000e+00 : f32
    %2 = vector.broadcast %cst : f32 to vector<24x64xf32>
    %cst_3 = arith.constant 0.000000e+00 : f32
    %3 = vector.broadcast %cst_3 : f32 to vector<24x64xf32>
    %4 = vector.broadcast %1 : vector<1x64xf32> to vector<24x64xf32>
    %5 = arith.addf %3, %4 : vector<24x64xf32>
    %c0_4 = arith.constant 0 : index
    %c0_5 = arith.constant 0 : index
    %c0_6 = arith.constant 0 : index
    %c0_7 = arith.constant 0 : index
    %6 = vector.load %arg1[%c0_4, %c0_5, %c0_6, %c0_7] : memref<1x4x38x64xbf16, #tpu.memory_space<vmem>>, vector<1x1x24x64xbf16>
    %7 = vector.shape_cast %6 : vector<1x1x24x64xbf16> to vector<24x64xbf16>
    %8 = arith.extf %7 : vector<24x64xbf16> to vector<24x64xf32>
    %9 = vector.extract_strided_slice %0 {offsets = [0, 0], sizes = [1, 64], strides = [1, 1]} : vector<27x64xf32> to vector<1x64xf32>
    %10 = vector.shape_cast %9 : vector<1x64xf32> to vector<64xf32>
    %11 = vector.shape_cast %10 : vector<64xf32> to vector<1x64xf32>
    %12 = vector.broadcast %11 : vector<1x64xf32> to vector<24x64xf32>
    %13 = arith.mulf %8, %12 : vector<24x64xf32>
    %14 = arith.addf %5, %13 : vector<24x64xf32>
    %c0_8 = arith.constant 0 : index
    %c0_9 = arith.constant 0 : index
    %c1 = arith.constant 1 : index
    %c0_10 = arith.constant 0 : index
    %15 = vector.load %arg1[%c0_8, %c0_9, %c1, %c0_10] : memref<1x4x38x64xbf16, #tpu.memory_space<vmem>>, vector<1x1x24x64xbf16>
    %16 = vector.shape_cast %15 : vector<1x1x24x64xbf16> to vector<24x64xbf16>
    %17 = arith.extf %16 : vector<24x64xbf16> to vector<24x64xf32>
    %18 = vector.extract_strided_slice %0 {offsets = [1, 0], sizes = [1, 64], strides = [1, 1]} : vector<27x64xf32> to vector<1x64xf32>
    %19 = vector.shape_cast %18 : vector<1x64xf32> to vector<64xf32>
    %20 = vector.shape_cast %19 : vector<64xf32> to vector<1x64xf32>
    %21 = vector.broadcast %20 : vector<1x64xf32> to vector<24x64xf32>
    %22 = arith.mulf %17, %21 : vector<24x64xf32>
    %23 = arith.addf %14, %22 : vector<24x64xf32>
    %c0_11 = arith.constant 0 : index
    %c0_12 = arith.constant 0 : index
    %c2 = arith.constant 2 : index
    %c0_13 = arith.constant 0 : index
    %24 = vector.load %arg1[%c0_11, %c0_12, %c2, %c0_13] : memref<1x4x38x64xbf16, #tpu.memory_space<vmem>>, vector<1x1x24x64xbf16>
    %25 = vector.shape_cast %24 : vector<1x1x24x64xbf16> to vector<24x64xbf16>
    %26 = arith.extf %25 : vector<24x64xbf16> to vector<24x64xf32>
    %27 = vector.extract_strided_slice %0 {offsets = [2, 0], sizes = [1, 64], strides = [1, 1]} : vector<27x64xf32> to vector<1x64xf32>
    %28 = vector.shape_cast %27 : vector<1x64xf32> to vector<64xf32>
    %29 = vector.shape_cast %28 : vector<64xf32> to vector<1x64xf32>
    %30 = vector.broadcast %29 : vector<1x64xf32> to vector<24x64xf32>
    %31 = arith.mulf %26, %30 : vector<24x64xf32>
    %32 = arith.addf %23, %31 : vector<24x64xf32>
    %c0_14 = arith.constant 0 : index
    %c0_15 = arith.constant 0 : index
    %c6 = arith.constant 6 : index
    %c0_16 = arith.constant 0 : index
    %33 = vector.load %arg1[%c0_14, %c0_15, %c6, %c0_16] : memref<1x4x38x64xbf16, #tpu.memory_space<vmem>>, vector<1x1x24x64xbf16>
    %34 = vector.shape_cast %33 : vector<1x1x24x64xbf16> to vector<24x64xbf16>
    %35 = arith.extf %34 : vector<24x64xbf16> to vector<24x64xf32>
    %36 = vector.extract_strided_slice %0 {offsets = [3, 0], sizes = [1, 64], strides = [1, 1]} : vector<27x64xf32> to vector<1x64xf32>
    %37 = vector.shape_cast %36 : vector<1x64xf32> to vector<64xf32>
    %38 = vector.shape_cast %37 : vector<64xf32> to vector<1x64xf32>
    %39 = vector.broadcast %38 : vector<1x64xf32> to vector<24x64xf32>
    %40 = arith.mulf %35, %39 : vector<24x64xf32>
    %41 = arith.addf %32, %40 : vector<24x64xf32>
    %c0_17 = arith.constant 0 : index
    %c0_18 = arith.constant 0 : index
    %c7 = arith.constant 7 : index
    %c0_19 = arith.constant 0 : index
    %42 = vector.load %arg1[%c0_17, %c0_18, %c7, %c0_19] : memref<1x4x38x64xbf16, #tpu.memory_space<vmem>>, vector<1x1x24x64xbf16>
    %43 = vector.shape_cast %42 : vector<1x1x24x64xbf16> to vector<24x64xbf16>
    %44 = arith.extf %43 : vector<24x64xbf16> to vector<24x64xf32>
    %45 = vector.extract_strided_slice %0 {offsets = [4, 0], sizes = [1, 64], strides = [1, 1]} : vector<27x64xf32> to vector<1x64xf32>
    %46 = vector.shape_cast %45 : vector<1x64xf32> to vector<64xf32>
    %47 = vector.shape_cast %46 : vector<64xf32> to vector<1x64xf32>
    %48 = vector.broadcast %47 : vector<1x64xf32> to vector<24x64xf32>
    %49 = arith.mulf %44, %48 : vector<24x64xf32>
    %50 = arith.addf %41, %49 : vector<24x64xf32>
    %c0_20 = arith.constant 0 : index
    %c0_21 = arith.constant 0 : index
    %c8 = arith.constant 8 : index
    %c0_22 = arith.constant 0 : index
    %51 = vector.load %arg1[%c0_20, %c0_21, %c8, %c0_22] : memref<1x4x38x64xbf16, #tpu.memory_space<vmem>>, vector<1x1x24x64xbf16>
    %52 = vector.shape_cast %51 : vector<1x1x24x64xbf16> to vector<24x64xbf16>
    %53 = arith.extf %52 : vector<24x64xbf16> to vector<24x64xf32>
    %54 = vector.extract_strided_slice %0 {offsets = [5, 0], sizes = [1, 64], strides = [1, 1]} : vector<27x64xf32> to vector<1x64xf32>
    %55 = vector.shape_cast %54 : vector<1x64xf32> to vector<64xf32>
    %56 = vector.shape_cast %55 : vector<64xf32> to vector<1x64xf32>
    %57 = vector.broadcast %56 : vector<1x64xf32> to vector<24x64xf32>
    %58 = arith.mulf %53, %57 : vector<24x64xf32>
    %59 = arith.addf %50, %58 : vector<24x64xf32>
    %c0_23 = arith.constant 0 : index
    %c0_24 = arith.constant 0 : index
    %c12 = arith.constant 12 : index
    %c0_25 = arith.constant 0 : index
    %60 = vector.load %arg1[%c0_23, %c0_24, %c12, %c0_25] : memref<1x4x38x64xbf16, #tpu.memory_space<vmem>>, vector<1x1x24x64xbf16>
    %61 = vector.shape_cast %60 : vector<1x1x24x64xbf16> to vector<24x64xbf16>
    %62 = arith.extf %61 : vector<24x64xbf16> to vector<24x64xf32>
    %63 = vector.extract_strided_slice %0 {offsets = [6, 0], sizes = [1, 64], strides = [1, 1]} : vector<27x64xf32> to vector<1x64xf32>
    %64 = vector.shape_cast %63 : vector<1x64xf32> to vector<64xf32>
    %65 = vector.shape_cast %64 : vector<64xf32> to vector<1x64xf32>
    %66 = vector.broadcast %65 : vector<1x64xf32> to vector<24x64xf32>
    %67 = arith.mulf %62, %66 : vector<24x64xf32>
    %68 = arith.addf %59, %67 : vector<24x64xf32>
    %c0_26 = arith.constant 0 : index
    %c0_27 = arith.constant 0 : index
    %c13 = arith.constant 13 : index
    %c0_28 = arith.constant 0 : index
    %69 = vector.load %arg1[%c0_26, %c0_27, %c13, %c0_28] : memref<1x4x38x64xbf16, #tpu.memory_space<vmem>>, vector<1x1x24x64xbf16>
    %70 = vector.shape_cast %69 : vector<1x1x24x64xbf16> to vector<24x64xbf16>
    %71 = arith.extf %70 : vector<24x64xbf16> to vector<24x64xf32>
    %72 = vector.extract_strided_slice %0 {offsets = [7, 0], sizes = [1, 64], strides = [1, 1]} : vector<27x64xf32> to vector<1x64xf32>
    %73 = vector.shape_cast %72 : vector<1x64xf32> to vector<64xf32>
    %74 = vector.shape_cast %73 : vector<64xf32> to vector<1x64xf32>
    %75 = vector.broadcast %74 : vector<1x64xf32> to vector<24x64xf32>
    %76 = arith.mulf %71, %75 : vector<24x64xf32>
    %77 = arith.addf %68, %76 : vector<24x64xf32>
    %c0_29 = arith.constant 0 : index
    %c0_30 = arith.constant 0 : index
    %c14 = arith.constant 14 : index
    %c0_31 = arith.constant 0 : index
    %78 = vector.load %arg1[%c0_29, %c0_30, %c14, %c0_31] : memref<1x4x38x64xbf16, #tpu.memory_space<vmem>>, vector<1x1x24x64xbf16>
    %79 = vector.shape_cast %78 : vector<1x1x24x64xbf16> to vector<24x64xbf16>
    %80 = arith.extf %79 : vector<24x64xbf16> to vector<24x64xf32>
    %81 = vector.extract_strided_slice %0 {offsets = [8, 0], sizes = [1, 64], strides = [1, 1]} : vector<27x64xf32> to vector<1x64xf32>
    %82 = vector.shape_cast %81 : vector<1x64xf32> to vector<64xf32>
    %83 = vector.shape_cast %82 : vector<64xf32> to vector<1x64xf32>
    %84 = vector.broadcast %83 : vector<1x64xf32> to vector<24x64xf32>
    %85 = arith.mulf %80, %84 : vector<24x64xf32>
    %86 = arith.addf %77, %85 : vector<24x64xf32>
    %c0_32 = arith.constant 0 : index
    %c1_33 = arith.constant 1 : index
    %c0_34 = arith.constant 0 : index
    %c0_35 = arith.constant 0 : index
    %87 = vector.load %arg1[%c0_32, %c1_33, %c0_34, %c0_35] : memref<1x4x38x64xbf16, #tpu.memory_space<vmem>>, vector<1x1x24x64xbf16>
    %88 = vector.shape_cast %87 : vector<1x1x24x64xbf16> to vector<24x64xbf16>
    %89 = arith.extf %88 : vector<24x64xbf16> to vector<24x64xf32>
    %90 = vector.extract_strided_slice %0 {offsets = [9, 0], sizes = [1, 64], strides = [1, 1]} : vector<27x64xf32> to vector<1x64xf32>
    %91 = vector.shape_cast %90 : vector<1x64xf32> to vector<64xf32>
    %92 = vector.shape_cast %91 : vector<64xf32> to vector<1x64xf32>
    %93 = vector.broadcast %92 : vector<1x64xf32> to vector<24x64xf32>
    %94 = arith.mulf %89, %93 : vector<24x64xf32>
    %95 = arith.addf %86, %94 : vector<24x64xf32>
    %c0_36 = arith.constant 0 : index
    %c1_37 = arith.constant 1 : index
    %c1_38 = arith.constant 1 : index
    %c0_39 = arith.constant 0 : index
    %96 = vector.load %arg1[%c0_36, %c1_37, %c1_38, %c0_39] : memref<1x4x38x64xbf16, #tpu.memory_space<vmem>>, vector<1x1x24x64xbf16>
    %97 = vector.shape_cast %96 : vector<1x1x24x64xbf16> to vector<24x64xbf16>
    %98 = arith.extf %97 : vector<24x64xbf16> to vector<24x64xf32>
    %99 = vector.extract_strided_slice %0 {offsets = [10, 0], sizes = [1, 64], strides = [1, 1]} : vector<27x64xf32> to vector<1x64xf32>
    %100 = vector.shape_cast %99 : vector<1x64xf32> to vector<64xf32>
    %101 = vector.shape_cast %100 : vector<64xf32> to vector<1x64xf32>
    %102 = vector.broadcast %101 : vector<1x64xf32> to vector<24x64xf32>
    %103 = arith.mulf %98, %102 : vector<24x64xf32>
    %104 = arith.addf %95, %103 : vector<24x64xf32>
    %c0_40 = arith.constant 0 : index
    %c1_41 = arith.constant 1 : index
    %c2_42 = arith.constant 2 : index
    %c0_43 = arith.constant 0 : index
    %105 = vector.load %arg1[%c0_40, %c1_41, %c2_42, %c0_43] : memref<1x4x38x64xbf16, #tpu.memory_space<vmem>>, vector<1x1x24x64xbf16>
    %106 = vector.shape_cast %105 : vector<1x1x24x64xbf16> to vector<24x64xbf16>
    %107 = arith.extf %106 : vector<24x64xbf16> to vector<24x64xf32>
    %108 = vector.extract_strided_slice %0 {offsets = [11, 0], sizes = [1, 64], strides = [1, 1]} : vector<27x64xf32> to vector<1x64xf32>
    %109 = vector.shape_cast %108 : vector<1x64xf32> to vector<64xf32>
    %110 = vector.shape_cast %109 : vector<64xf32> to vector<1x64xf32>
    %111 = vector.broadcast %110 : vector<1x64xf32> to vector<24x64xf32>
    %112 = arith.mulf %107, %111 : vector<24x64xf32>
    %113 = arith.addf %104, %112 : vector<24x64xf32>
    %c0_44 = arith.constant 0 : index
    %c1_45 = arith.constant 1 : index
    %c6_46 = arith.constant 6 : index
    %c0_47 = arith.constant 0 : index
    %114 = vector.load %arg1[%c0_44, %c1_45, %c6_46, %c0_47] : memref<1x4x38x64xbf16, #tpu.memory_space<vmem>>, vector<1x1x24x64xbf16>
    %115 = vector.shape_cast %114 : vector<1x1x24x64xbf16> to vector<24x64xbf16>
    %116 = arith.extf %115 : vector<24x64xbf16> to vector<24x64xf32>
    %117 = vector.extract_strided_slice %0 {offsets = [12, 0], sizes = [1, 64], strides = [1, 1]} : vector<27x64xf32> to vector<1x64xf32>
    %118 = vector.shape_cast %117 : vector<1x64xf32> to vector<64xf32>
    %119 = vector.shape_cast %118 : vector<64xf32> to vector<1x64xf32>
    %120 = vector.broadcast %119 : vector<1x64xf32> to vector<24x64xf32>
    %121 = arith.mulf %116, %120 : vector<24x64xf32>
    %122 = arith.addf %113, %121 : vector<24x64xf32>
    %c0_48 = arith.constant 0 : index
    %c1_49 = arith.constant 1 : index
    %c7_50 = arith.constant 7 : index
    %c0_51 = arith.constant 0 : index
    %123 = vector.load %arg1[%c0_48, %c1_49, %c7_50, %c0_51] : memref<1x4x38x64xbf16, #tpu.memory_space<vmem>>, vector<1x1x24x64xbf16>
    %124 = vector.shape_cast %123 : vector<1x1x24x64xbf16> to vector<24x64xbf16>
    %125 = arith.extf %124 : vector<24x64xbf16> to vector<24x64xf32>
    %126 = vector.extract_strided_slice %0 {offsets = [13, 0], sizes = [1, 64], strides = [1, 1]} : vector<27x64xf32> to vector<1x64xf32>
    %127 = vector.shape_cast %126 : vector<1x64xf32> to vector<64xf32>
    %128 = vector.shape_cast %127 : vector<64xf32> to vector<1x64xf32>
    %129 = vector.broadcast %128 : vector<1x64xf32> to vector<24x64xf32>
    %130 = arith.mulf %125, %129 : vector<24x64xf32>
    %131 = arith.addf %122, %130 : vector<24x64xf32>
    %c0_52 = arith.constant 0 : index
    %c1_53 = arith.constant 1 : index
    %c8_54 = arith.constant 8 : index
    %c0_55 = arith.constant 0 : index
    %132 = vector.load %arg1[%c0_52, %c1_53, %c8_54, %c0_55] : memref<1x4x38x64xbf16, #tpu.memory_space<vmem>>, vector<1x1x24x64xbf16>
    %133 = vector.shape_cast %132 : vector<1x1x24x64xbf16> to vector<24x64xbf16>
    %134 = arith.extf %133 : vector<24x64xbf16> to vector<24x64xf32>
    %135 = vector.extract_strided_slice %0 {offsets = [14, 0], sizes = [1, 64], strides = [1, 1]} : vector<27x64xf32> to vector<1x64xf32>
    %136 = vector.shape_cast %135 : vector<1x64xf32> to vector<64xf32>
    %137 = vector.shape_cast %136 : vector<64xf32> to vector<1x64xf32>
    %138 = vector.broadcast %137 : vector<1x64xf32> to vector<24x64xf32>
    %139 = arith.mulf %134, %138 : vector<24x64xf32>
    %140 = arith.addf %131, %139 : vector<24x64xf32>
    %c0_56 = arith.constant 0 : index
    %c1_57 = arith.constant 1 : index
    %c12_58 = arith.constant 12 : index
    %c0_59 = arith.constant 0 : index
    %141 = vector.load %arg1[%c0_56, %c1_57, %c12_58, %c0_59] : memref<1x4x38x64xbf16, #tpu.memory_space<vmem>>, vector<1x1x24x64xbf16>
    %142 = vector.shape_cast %141 : vector<1x1x24x64xbf16> to vector<24x64xbf16>
    %143 = arith.extf %142 : vector<24x64xbf16> to vector<24x64xf32>
    %144 = vector.extract_strided_slice %0 {offsets = [15, 0], sizes = [1, 64], strides = [1, 1]} : vector<27x64xf32> to vector<1x64xf32>
    %145 = vector.shape_cast %144 : vector<1x64xf32> to vector<64xf32>
    %146 = vector.shape_cast %145 : vector<64xf32> to vector<1x64xf32>
    %147 = vector.broadcast %146 : vector<1x64xf32> to vector<24x64xf32>
    %148 = arith.mulf %143, %147 : vector<24x64xf32>
    %149 = arith.addf %140, %148 : vector<24x64xf32>
    %c0_60 = arith.constant 0 : index
    %c1_61 = arith.constant 1 : index
    %c13_62 = arith.constant 13 : index
    %c0_63 = arith.constant 0 : index
    %150 = vector.load %arg1[%c0_60, %c1_61, %c13_62, %c0_63] : memref<1x4x38x64xbf16, #tpu.memory_space<vmem>>, vector<1x1x24x64xbf16>
    %151 = vector.shape_cast %150 : vector<1x1x24x64xbf16> to vector<24x64xbf16>
    %152 = arith.extf %151 : vector<24x64xbf16> to vector<24x64xf32>
    %153 = vector.extract_strided_slice %0 {offsets = [16, 0], sizes = [1, 64], strides = [1, 1]} : vector<27x64xf32> to vector<1x64xf32>
    %154 = vector.shape_cast %153 : vector<1x64xf32> to vector<64xf32>
    %155 = vector.shape_cast %154 : vector<64xf32> to vector<1x64xf32>
    %156 = vector.broadcast %155 : vector<1x64xf32> to vector<24x64xf32>
    %157 = arith.mulf %152, %156 : vector<24x64xf32>
    %158 = arith.addf %149, %157 : vector<24x64xf32>
    %c0_64 = arith.constant 0 : index
    %c1_65 = arith.constant 1 : index
    %c14_66 = arith.constant 14 : index
    %c0_67 = arith.constant 0 : index
    %159 = vector.load %arg1[%c0_64, %c1_65, %c14_66, %c0_67] : memref<1x4x38x64xbf16, #tpu.memory_space<vmem>>, vector<1x1x24x64xbf16>
    %160 = vector.shape_cast %159 : vector<1x1x24x64xbf16> to vector<24x64xbf16>
    %161 = arith.extf %160 : vector<24x64xbf16> to vector<24x64xf32>
    %162 = vector.extract_strided_slice %0 {offsets = [17, 0], sizes = [1, 64], strides = [1, 1]} : vector<27x64xf32> to vector<1x64xf32>
    %163 = vector.shape_cast %162 : vector<1x64xf32> to vector<64xf32>
    %164 = vector.shape_cast %163 : vector<64xf32> to vector<1x64xf32>
    %165 = vector.broadcast %164 : vector<1x64xf32> to vector<24x64xf32>
    %166 = arith.mulf %161, %165 : vector<24x64xf32>
    %167 = arith.addf %158, %166 : vector<24x64xf32>
    %c0_68 = arith.constant 0 : index
    %c2_69 = arith.constant 2 : index
    %c0_70 = arith.constant 0 : index
    %c0_71 = arith.constant 0 : index
    %168 = vector.load %arg1[%c0_68, %c2_69, %c0_70, %c0_71] : memref<1x4x38x64xbf16, #tpu.memory_space<vmem>>, vector<1x1x24x64xbf16>
    %169 = vector.shape_cast %168 : vector<1x1x24x64xbf16> to vector<24x64xbf16>
    %170 = arith.extf %169 : vector<24x64xbf16> to vector<24x64xf32>
    %171 = vector.extract_strided_slice %0 {offsets = [18, 0], sizes = [1, 64], strides = [1, 1]} : vector<27x64xf32> to vector<1x64xf32>
    %172 = vector.shape_cast %171 : vector<1x64xf32> to vector<64xf32>
    %173 = vector.shape_cast %172 : vector<64xf32> to vector<1x64xf32>
    %174 = vector.broadcast %173 : vector<1x64xf32> to vector<24x64xf32>
    %175 = arith.mulf %170, %174 : vector<24x64xf32>
    %176 = arith.addf %167, %175 : vector<24x64xf32>
    %c0_72 = arith.constant 0 : index
    %c2_73 = arith.constant 2 : index
    %c1_74 = arith.constant 1 : index
    %c0_75 = arith.constant 0 : index
    %177 = vector.load %arg1[%c0_72, %c2_73, %c1_74, %c0_75] : memref<1x4x38x64xbf16, #tpu.memory_space<vmem>>, vector<1x1x24x64xbf16>
    %178 = vector.shape_cast %177 : vector<1x1x24x64xbf16> to vector<24x64xbf16>
    %179 = arith.extf %178 : vector<24x64xbf16> to vector<24x64xf32>
    %180 = vector.extract_strided_slice %0 {offsets = [19, 0], sizes = [1, 64], strides = [1, 1]} : vector<27x64xf32> to vector<1x64xf32>
    %181 = vector.shape_cast %180 : vector<1x64xf32> to vector<64xf32>
    %182 = vector.shape_cast %181 : vector<64xf32> to vector<1x64xf32>
    %183 = vector.broadcast %182 : vector<1x64xf32> to vector<24x64xf32>
    %184 = arith.mulf %179, %183 : vector<24x64xf32>
    %185 = arith.addf %176, %184 : vector<24x64xf32>
    %c0_76 = arith.constant 0 : index
    %c2_77 = arith.constant 2 : index
    %c2_78 = arith.constant 2 : index
    %c0_79 = arith.constant 0 : index
    %186 = vector.load %arg1[%c0_76, %c2_77, %c2_78, %c0_79] : memref<1x4x38x64xbf16, #tpu.memory_space<vmem>>, vector<1x1x24x64xbf16>
    %187 = vector.shape_cast %186 : vector<1x1x24x64xbf16> to vector<24x64xbf16>
    %188 = arith.extf %187 : vector<24x64xbf16> to vector<24x64xf32>
    %189 = vector.extract_strided_slice %0 {offsets = [20, 0], sizes = [1, 64], strides = [1, 1]} : vector<27x64xf32> to vector<1x64xf32>
    %190 = vector.shape_cast %189 : vector<1x64xf32> to vector<64xf32>
    %191 = vector.shape_cast %190 : vector<64xf32> to vector<1x64xf32>
    %192 = vector.broadcast %191 : vector<1x64xf32> to vector<24x64xf32>
    %193 = arith.mulf %188, %192 : vector<24x64xf32>
    %194 = arith.addf %185, %193 : vector<24x64xf32>
    %c0_80 = arith.constant 0 : index
    %c2_81 = arith.constant 2 : index
    %c6_82 = arith.constant 6 : index
    %c0_83 = arith.constant 0 : index
    %195 = vector.load %arg1[%c0_80, %c2_81, %c6_82, %c0_83] : memref<1x4x38x64xbf16, #tpu.memory_space<vmem>>, vector<1x1x24x64xbf16>
    %196 = vector.shape_cast %195 : vector<1x1x24x64xbf16> to vector<24x64xbf16>
    %197 = arith.extf %196 : vector<24x64xbf16> to vector<24x64xf32>
    %198 = vector.extract_strided_slice %0 {offsets = [21, 0], sizes = [1, 64], strides = [1, 1]} : vector<27x64xf32> to vector<1x64xf32>
    %199 = vector.shape_cast %198 : vector<1x64xf32> to vector<64xf32>
    %200 = vector.shape_cast %199 : vector<64xf32> to vector<1x64xf32>
    %201 = vector.broadcast %200 : vector<1x64xf32> to vector<24x64xf32>
    %202 = arith.mulf %197, %201 : vector<24x64xf32>
    %203 = arith.addf %194, %202 : vector<24x64xf32>
    %c0_84 = arith.constant 0 : index
    %c2_85 = arith.constant 2 : index
    %c7_86 = arith.constant 7 : index
    %c0_87 = arith.constant 0 : index
    %204 = vector.load %arg1[%c0_84, %c2_85, %c7_86, %c0_87] : memref<1x4x38x64xbf16, #tpu.memory_space<vmem>>, vector<1x1x24x64xbf16>
    %205 = vector.shape_cast %204 : vector<1x1x24x64xbf16> to vector<24x64xbf16>
    %206 = arith.extf %205 : vector<24x64xbf16> to vector<24x64xf32>
    %207 = vector.extract_strided_slice %0 {offsets = [22, 0], sizes = [1, 64], strides = [1, 1]} : vector<27x64xf32> to vector<1x64xf32>
    %208 = vector.shape_cast %207 : vector<1x64xf32> to vector<64xf32>
    %209 = vector.shape_cast %208 : vector<64xf32> to vector<1x64xf32>
    %210 = vector.broadcast %209 : vector<1x64xf32> to vector<24x64xf32>
    %211 = arith.mulf %206, %210 : vector<24x64xf32>
    %212 = arith.addf %203, %211 : vector<24x64xf32>
    %c0_88 = arith.constant 0 : index
    %c2_89 = arith.constant 2 : index
    %c8_90 = arith.constant 8 : index
    %c0_91 = arith.constant 0 : index
    %213 = vector.load %arg1[%c0_88, %c2_89, %c8_90, %c0_91] : memref<1x4x38x64xbf16, #tpu.memory_space<vmem>>, vector<1x1x24x64xbf16>
    %214 = vector.shape_cast %213 : vector<1x1x24x64xbf16> to vector<24x64xbf16>
    %215 = arith.extf %214 : vector<24x64xbf16> to vector<24x64xf32>
    %216 = vector.extract_strided_slice %0 {offsets = [23, 0], sizes = [1, 64], strides = [1, 1]} : vector<27x64xf32> to vector<1x64xf32>
    %217 = vector.shape_cast %216 : vector<1x64xf32> to vector<64xf32>
    %218 = vector.shape_cast %217 : vector<64xf32> to vector<1x64xf32>
    %219 = vector.broadcast %218 : vector<1x64xf32> to vector<24x64xf32>
    %220 = arith.mulf %215, %219 : vector<24x64xf32>
    %221 = arith.addf %212, %220 : vector<24x64xf32>
    %c0_92 = arith.constant 0 : index
    %c2_93 = arith.constant 2 : index
    %c12_94 = arith.constant 12 : index
    %c0_95 = arith.constant 0 : index
    %222 = vector.load %arg1[%c0_92, %c2_93, %c12_94, %c0_95] : memref<1x4x38x64xbf16, #tpu.memory_space<vmem>>, vector<1x1x24x64xbf16>
    %223 = vector.shape_cast %222 : vector<1x1x24x64xbf16> to vector<24x64xbf16>
    %224 = arith.extf %223 : vector<24x64xbf16> to vector<24x64xf32>
    %225 = vector.extract_strided_slice %0 {offsets = [24, 0], sizes = [1, 64], strides = [1, 1]} : vector<27x64xf32> to vector<1x64xf32>
    %226 = vector.shape_cast %225 : vector<1x64xf32> to vector<64xf32>
    %227 = vector.shape_cast %226 : vector<64xf32> to vector<1x64xf32>
    %228 = vector.broadcast %227 : vector<1x64xf32> to vector<24x64xf32>
    %229 = arith.mulf %224, %228 : vector<24x64xf32>
    %230 = arith.addf %221, %229 : vector<24x64xf32>
    %c0_96 = arith.constant 0 : index
    %c2_97 = arith.constant 2 : index
    %c13_98 = arith.constant 13 : index
    %c0_99 = arith.constant 0 : index
    %231 = vector.load %arg1[%c0_96, %c2_97, %c13_98, %c0_99] : memref<1x4x38x64xbf16, #tpu.memory_space<vmem>>, vector<1x1x24x64xbf16>
    %232 = vector.shape_cast %231 : vector<1x1x24x64xbf16> to vector<24x64xbf16>
    %233 = arith.extf %232 : vector<24x64xbf16> to vector<24x64xf32>
    %234 = vector.extract_strided_slice %0 {offsets = [25, 0], sizes = [1, 64], strides = [1, 1]} : vector<27x64xf32> to vector<1x64xf32>
    %235 = vector.shape_cast %234 : vector<1x64xf32> to vector<64xf32>
    %236 = vector.shape_cast %235 : vector<64xf32> to vector<1x64xf32>
    %237 = vector.broadcast %236 : vector<1x64xf32> to vector<24x64xf32>
    %238 = arith.mulf %233, %237 : vector<24x64xf32>
    %239 = arith.addf %230, %238 : vector<24x64xf32>
    %c0_100 = arith.constant 0 : index
    %c2_101 = arith.constant 2 : index
    %c14_102 = arith.constant 14 : index
    %c0_103 = arith.constant 0 : index
    %240 = vector.load %arg1[%c0_100, %c2_101, %c14_102, %c0_103] : memref<1x4x38x64xbf16, #tpu.memory_space<vmem>>, vector<1x1x24x64xbf16>
    %241 = vector.shape_cast %240 : vector<1x1x24x64xbf16> to vector<24x64xbf16>
    %242 = arith.extf %241 : vector<24x64xbf16> to vector<24x64xf32>
    %243 = vector.extract_strided_slice %0 {offsets = [26, 0], sizes = [1, 64], strides = [1, 1]} : vector<27x64xf32> to vector<1x64xf32>
    %244 = vector.shape_cast %243 : vector<1x64xf32> to vector<64xf32>
    %245 = vector.shape_cast %244 : vector<64xf32> to vector<1x64xf32>
    %246 = vector.broadcast %245 : vector<1x64xf32> to vector<24x64xf32>
    %247 = arith.mulf %242, %246 : vector<24x64xf32>
    %248 = arith.addf %239, %247 : vector<24x64xf32>
    %249 = arith.truncf %248 : vector<24x64xf32> to vector<24x64xbf16>
    %c0_104 = arith.constant 0 : index
    %c0_105 = arith.constant 0 : index
    %c0_106 = arith.constant 0 : index
    %250 = vector.load %arg4[%c0_104, %c0_105, %c0_106] : memref<2x64x64xbf16, #tpu.memory_space<vmem>>, vector<1x64x64xbf16>
    %251 = vector.shape_cast %250 : vector<1x64x64xbf16> to vector<64x64xbf16>
    %cst_107 = arith.constant dense<0.000000e+00> : vector<24x64xf32>
    %252 = tpu.matmul %249, %251, %cst_107 {dimension_numbers = #tpu.dot_dimension_numbers<[1], [0], [0], [1], [0, 0, 1, 1], [], []>} : vector<24x64xbf16>, vector<64x64xbf16>, vector<24x64xf32> -> vector<24x64xf32>
    %253 = arith.addf %2, %252 : vector<24x64xf32>
    %cst_108 = arith.constant 0.000000e+00 : f32
    %254 = vector.broadcast %cst_108 : f32 to vector<24x64xf32>
    %255 = vector.broadcast %1 : vector<1x64xf32> to vector<24x64xf32>
    %256 = arith.addf %254, %255 : vector<24x64xf32>
    %c0_109 = arith.constant 0 : index
    %c1_110 = arith.constant 1 : index
    %c0_111 = arith.constant 0 : index
    %c0_112 = arith.constant 0 : index
    %257 = vector.load %arg1[%c0_109, %c1_110, %c0_111, %c0_112] : memref<1x4x38x64xbf16, #tpu.memory_space<vmem>>, vector<1x1x24x64xbf16>
    %258 = vector.shape_cast %257 : vector<1x1x24x64xbf16> to vector<24x64xbf16>
    %259 = arith.extf %258 : vector<24x64xbf16> to vector<24x64xf32>
    %260 = vector.extract_strided_slice %0 {offsets = [0, 0], sizes = [1, 64], strides = [1, 1]} : vector<27x64xf32> to vector<1x64xf32>
    %261 = vector.shape_cast %260 : vector<1x64xf32> to vector<64xf32>
    %262 = vector.shape_cast %261 : vector<64xf32> to vector<1x64xf32>
    %263 = vector.broadcast %262 : vector<1x64xf32> to vector<24x64xf32>
    %264 = arith.mulf %259, %263 : vector<24x64xf32>
    %265 = arith.addf %256, %264 : vector<24x64xf32>
    %c0_113 = arith.constant 0 : index
    %c1_114 = arith.constant 1 : index
    %c1_115 = arith.constant 1 : index
    %c0_116 = arith.constant 0 : index
    %266 = vector.load %arg1[%c0_113, %c1_114, %c1_115, %c0_116] : memref<1x4x38x64xbf16, #tpu.memory_space<vmem>>, vector<1x1x24x64xbf16>
    %267 = vector.shape_cast %266 : vector<1x1x24x64xbf16> to vector<24x64xbf16>
    %268 = arith.extf %267 : vector<24x64xbf16> to vector<24x64xf32>
    %269 = vector.extract_strided_slice %0 {offsets = [1, 0], sizes = [1, 64], strides = [1, 1]} : vector<27x64xf32> to vector<1x64xf32>
    %270 = vector.shape_cast %269 : vector<1x64xf32> to vector<64xf32>
    %271 = vector.shape_cast %270 : vector<64xf32> to vector<1x64xf32>
    %272 = vector.broadcast %271 : vector<1x64xf32> to vector<24x64xf32>
    %273 = arith.mulf %268, %272 : vector<24x64xf32>
    %274 = arith.addf %265, %273 : vector<24x64xf32>
    %c0_117 = arith.constant 0 : index
    %c1_118 = arith.constant 1 : index
    %c2_119 = arith.constant 2 : index
    %c0_120 = arith.constant 0 : index
    %275 = vector.load %arg1[%c0_117, %c1_118, %c2_119, %c0_120] : memref<1x4x38x64xbf16, #tpu.memory_space<vmem>>, vector<1x1x24x64xbf16>
    %276 = vector.shape_cast %275 : vector<1x1x24x64xbf16> to vector<24x64xbf16>
    %277 = arith.extf %276 : vector<24x64xbf16> to vector<24x64xf32>
    %278 = vector.extract_strided_slice %0 {offsets = [2, 0], sizes = [1, 64], strides = [1, 1]} : vector<27x64xf32> to vector<1x64xf32>
    %279 = vector.shape_cast %278 : vector<1x64xf32> to vector<64xf32>
    %280 = vector.shape_cast %279 : vector<64xf32> to vector<1x64xf32>
    %281 = vector.broadcast %280 : vector<1x64xf32> to vector<24x64xf32>
    %282 = arith.mulf %277, %281 : vector<24x64xf32>
    %283 = arith.addf %274, %282 : vector<24x64xf32>
    %c0_121 = arith.constant 0 : index
    %c1_122 = arith.constant 1 : index
    %c6_123 = arith.constant 6 : index
    %c0_124 = arith.constant 0 : index
    %284 = vector.load %arg1[%c0_121, %c1_122, %c6_123, %c0_124] : memref<1x4x38x64xbf16, #tpu.memory_space<vmem>>, vector<1x1x24x64xbf16>
    %285 = vector.shape_cast %284 : vector<1x1x24x64xbf16> to vector<24x64xbf16>
    %286 = arith.extf %285 : vector<24x64xbf16> to vector<24x64xf32>
    %287 = vector.extract_strided_slice %0 {offsets = [3, 0], sizes = [1, 64], strides = [1, 1]} : vector<27x64xf32> to vector<1x64xf32>
    %288 = vector.shape_cast %287 : vector<1x64xf32> to vector<64xf32>
    %289 = vector.shape_cast %288 : vector<64xf32> to vector<1x64xf32>
    %290 = vector.broadcast %289 : vector<1x64xf32> to vector<24x64xf32>
    %291 = arith.mulf %286, %290 : vector<24x64xf32>
    %292 = arith.addf %283, %291 : vector<24x64xf32>
    %c0_125 = arith.constant 0 : index
    %c1_126 = arith.constant 1 : index
    %c7_127 = arith.constant 7 : index
    %c0_128 = arith.constant 0 : index
    %293 = vector.load %arg1[%c0_125, %c1_126, %c7_127, %c0_128] : memref<1x4x38x64xbf16, #tpu.memory_space<vmem>>, vector<1x1x24x64xbf16>
    %294 = vector.shape_cast %293 : vector<1x1x24x64xbf16> to vector<24x64xbf16>
    %295 = arith.extf %294 : vector<24x64xbf16> to vector<24x64xf32>
    %296 = vector.extract_strided_slice %0 {offsets = [4, 0], sizes = [1, 64], strides = [1, 1]} : vector<27x64xf32> to vector<1x64xf32>
    %297 = vector.shape_cast %296 : vector<1x64xf32> to vector<64xf32>
    %298 = vector.shape_cast %297 : vector<64xf32> to vector<1x64xf32>
    %299 = vector.broadcast %298 : vector<1x64xf32> to vector<24x64xf32>
    %300 = arith.mulf %295, %299 : vector<24x64xf32>
    %301 = arith.addf %292, %300 : vector<24x64xf32>
    %c0_129 = arith.constant 0 : index
    %c1_130 = arith.constant 1 : index
    %c8_131 = arith.constant 8 : index
    %c0_132 = arith.constant 0 : index
    %302 = vector.load %arg1[%c0_129, %c1_130, %c8_131, %c0_132] : memref<1x4x38x64xbf16, #tpu.memory_space<vmem>>, vector<1x1x24x64xbf16>
    %303 = vector.shape_cast %302 : vector<1x1x24x64xbf16> to vector<24x64xbf16>
    %304 = arith.extf %303 : vector<24x64xbf16> to vector<24x64xf32>
    %305 = vector.extract_strided_slice %0 {offsets = [5, 0], sizes = [1, 64], strides = [1, 1]} : vector<27x64xf32> to vector<1x64xf32>
    %306 = vector.shape_cast %305 : vector<1x64xf32> to vector<64xf32>
    %307 = vector.shape_cast %306 : vector<64xf32> to vector<1x64xf32>
    %308 = vector.broadcast %307 : vector<1x64xf32> to vector<24x64xf32>
    %309 = arith.mulf %304, %308 : vector<24x64xf32>
    %310 = arith.addf %301, %309 : vector<24x64xf32>
    %c0_133 = arith.constant 0 : index
    %c1_134 = arith.constant 1 : index
    %c12_135 = arith.constant 12 : index
    %c0_136 = arith.constant 0 : index
    %311 = vector.load %arg1[%c0_133, %c1_134, %c12_135, %c0_136] : memref<1x4x38x64xbf16, #tpu.memory_space<vmem>>, vector<1x1x24x64xbf16>
    %312 = vector.shape_cast %311 : vector<1x1x24x64xbf16> to vector<24x64xbf16>
    %313 = arith.extf %312 : vector<24x64xbf16> to vector<24x64xf32>
    %314 = vector.extract_strided_slice %0 {offsets = [6, 0], sizes = [1, 64], strides = [1, 1]} : vector<27x64xf32> to vector<1x64xf32>
    %315 = vector.shape_cast %314 : vector<1x64xf32> to vector<64xf32>
    %316 = vector.shape_cast %315 : vector<64xf32> to vector<1x64xf32>
    %317 = vector.broadcast %316 : vector<1x64xf32> to vector<24x64xf32>
    %318 = arith.mulf %313, %317 : vector<24x64xf32>
    %319 = arith.addf %310, %318 : vector<24x64xf32>
    %c0_137 = arith.constant 0 : index
    %c1_138 = arith.constant 1 : index
    %c13_139 = arith.constant 13 : index
    %c0_140 = arith.constant 0 : index
    %320 = vector.load %arg1[%c0_137, %c1_138, %c13_139, %c0_140] : memref<1x4x38x64xbf16, #tpu.memory_space<vmem>>, vector<1x1x24x64xbf16>
    %321 = vector.shape_cast %320 : vector<1x1x24x64xbf16> to vector<24x64xbf16>
    %322 = arith.extf %321 : vector<24x64xbf16> to vector<24x64xf32>
    %323 = vector.extract_strided_slice %0 {offsets = [7, 0], sizes = [1, 64], strides = [1, 1]} : vector<27x64xf32> to vector<1x64xf32>
    %324 = vector.shape_cast %323 : vector<1x64xf32> to vector<64xf32>
    %325 = vector.shape_cast %324 : vector<64xf32> to vector<1x64xf32>
    %326 = vector.broadcast %325 : vector<1x64xf32> to vector<24x64xf32>
    %327 = arith.mulf %322, %326 : vector<24x64xf32>
    %328 = arith.addf %319, %327 : vector<24x64xf32>
    %c0_141 = arith.constant 0 : index
    %c1_142 = arith.constant 1 : index
    %c14_143 = arith.constant 14 : index
    %c0_144 = arith.constant 0 : index
    %329 = vector.load %arg1[%c0_141, %c1_142, %c14_143, %c0_144] : memref<1x4x38x64xbf16, #tpu.memory_space<vmem>>, vector<1x1x24x64xbf16>
    %330 = vector.shape_cast %329 : vector<1x1x24x64xbf16> to vector<24x64xbf16>
    %331 = arith.extf %330 : vector<24x64xbf16> to vector<24x64xf32>
    %332 = vector.extract_strided_slice %0 {offsets = [8, 0], sizes = [1, 64], strides = [1, 1]} : vector<27x64xf32> to vector<1x64xf32>
    %333 = vector.shape_cast %332 : vector<1x64xf32> to vector<64xf32>
    %334 = vector.shape_cast %333 : vector<64xf32> to vector<1x64xf32>
    %335 = vector.broadcast %334 : vector<1x64xf32> to vector<24x64xf32>
    %336 = arith.mulf %331, %335 : vector<24x64xf32>
    %337 = arith.addf %328, %336 : vector<24x64xf32>
    %c0_145 = arith.constant 0 : index
    %c2_146 = arith.constant 2 : index
    %c0_147 = arith.constant 0 : index
    %c0_148 = arith.constant 0 : index
    %338 = vector.load %arg1[%c0_145, %c2_146, %c0_147, %c0_148] : memref<1x4x38x64xbf16, #tpu.memory_space<vmem>>, vector<1x1x24x64xbf16>
    %339 = vector.shape_cast %338 : vector<1x1x24x64xbf16> to vector<24x64xbf16>
    %340 = arith.extf %339 : vector<24x64xbf16> to vector<24x64xf32>
    %341 = vector.extract_strided_slice %0 {offsets = [9, 0], sizes = [1, 64], strides = [1, 1]} : vector<27x64xf32> to vector<1x64xf32>
    %342 = vector.shape_cast %341 : vector<1x64xf32> to vector<64xf32>
    %343 = vector.shape_cast %342 : vector<64xf32> to vector<1x64xf32>
    %344 = vector.broadcast %343 : vector<1x64xf32> to vector<24x64xf32>
    %345 = arith.mulf %340, %344 : vector<24x64xf32>
    %346 = arith.addf %337, %345 : vector<24x64xf32>
    %c0_149 = arith.constant 0 : index
    %c2_150 = arith.constant 2 : index
    %c1_151 = arith.constant 1 : index
    %c0_152 = arith.constant 0 : index
    %347 = vector.load %arg1[%c0_149, %c2_150, %c1_151, %c0_152] : memref<1x4x38x64xbf16, #tpu.memory_space<vmem>>, vector<1x1x24x64xbf16>
    %348 = vector.shape_cast %347 : vector<1x1x24x64xbf16> to vector<24x64xbf16>
    %349 = arith.extf %348 : vector<24x64xbf16> to vector<24x64xf32>
    %350 = vector.extract_strided_slice %0 {offsets = [10, 0], sizes = [1, 64], strides = [1, 1]} : vector<27x64xf32> to vector<1x64xf32>
    %351 = vector.shape_cast %350 : vector<1x64xf32> to vector<64xf32>
    %352 = vector.shape_cast %351 : vector<64xf32> to vector<1x64xf32>
    %353 = vector.broadcast %352 : vector<1x64xf32> to vector<24x64xf32>
    %354 = arith.mulf %349, %353 : vector<24x64xf32>
    %355 = arith.addf %346, %354 : vector<24x64xf32>
    %c0_153 = arith.constant 0 : index
    %c2_154 = arith.constant 2 : index
    %c2_155 = arith.constant 2 : index
    %c0_156 = arith.constant 0 : index
    %356 = vector.load %arg1[%c0_153, %c2_154, %c2_155, %c0_156] : memref<1x4x38x64xbf16, #tpu.memory_space<vmem>>, vector<1x1x24x64xbf16>
    %357 = vector.shape_cast %356 : vector<1x1x24x64xbf16> to vector<24x64xbf16>
    %358 = arith.extf %357 : vector<24x64xbf16> to vector<24x64xf32>
    %359 = vector.extract_strided_slice %0 {offsets = [11, 0], sizes = [1, 64], strides = [1, 1]} : vector<27x64xf32> to vector<1x64xf32>
    %360 = vector.shape_cast %359 : vector<1x64xf32> to vector<64xf32>
    %361 = vector.shape_cast %360 : vector<64xf32> to vector<1x64xf32>
    %362 = vector.broadcast %361 : vector<1x64xf32> to vector<24x64xf32>
    %363 = arith.mulf %358, %362 : vector<24x64xf32>
    %364 = arith.addf %355, %363 : vector<24x64xf32>
    %c0_157 = arith.constant 0 : index
    %c2_158 = arith.constant 2 : index
    %c6_159 = arith.constant 6 : index
    %c0_160 = arith.constant 0 : index
    %365 = vector.load %arg1[%c0_157, %c2_158, %c6_159, %c0_160] : memref<1x4x38x64xbf16, #tpu.memory_space<vmem>>, vector<1x1x24x64xbf16>
    %366 = vector.shape_cast %365 : vector<1x1x24x64xbf16> to vector<24x64xbf16>
    %367 = arith.extf %366 : vector<24x64xbf16> to vector<24x64xf32>
    %368 = vector.extract_strided_slice %0 {offsets = [12, 0], sizes = [1, 64], strides = [1, 1]} : vector<27x64xf32> to vector<1x64xf32>
    %369 = vector.shape_cast %368 : vector<1x64xf32> to vector<64xf32>
    %370 = vector.shape_cast %369 : vector<64xf32> to vector<1x64xf32>
    %371 = vector.broadcast %370 : vector<1x64xf32> to vector<24x64xf32>
    %372 = arith.mulf %367, %371 : vector<24x64xf32>
    %373 = arith.addf %364, %372 : vector<24x64xf32>
    %c0_161 = arith.constant 0 : index
    %c2_162 = arith.constant 2 : index
    %c7_163 = arith.constant 7 : index
    %c0_164 = arith.constant 0 : index
    %374 = vector.load %arg1[%c0_161, %c2_162, %c7_163, %c0_164] : memref<1x4x38x64xbf16, #tpu.memory_space<vmem>>, vector<1x1x24x64xbf16>
    %375 = vector.shape_cast %374 : vector<1x1x24x64xbf16> to vector<24x64xbf16>
    %376 = arith.extf %375 : vector<24x64xbf16> to vector<24x64xf32>
    %377 = vector.extract_strided_slice %0 {offsets = [13, 0], sizes = [1, 64], strides = [1, 1]} : vector<27x64xf32> to vector<1x64xf32>
    %378 = vector.shape_cast %377 : vector<1x64xf32> to vector<64xf32>
    %379 = vector.shape_cast %378 : vector<64xf32> to vector<1x64xf32>
    %380 = vector.broadcast %379 : vector<1x64xf32> to vector<24x64xf32>
    %381 = arith.mulf %376, %380 : vector<24x64xf32>
    %382 = arith.addf %373, %381 : vector<24x64xf32>
    %c0_165 = arith.constant 0 : index
    %c2_166 = arith.constant 2 : index
    %c8_167 = arith.constant 8 : index
    %c0_168 = arith.constant 0 : index
    %383 = vector.load %arg1[%c0_165, %c2_166, %c8_167, %c0_168] : memref<1x4x38x64xbf16, #tpu.memory_space<vmem>>, vector<1x1x24x64xbf16>
    %384 = vector.shape_cast %383 : vector<1x1x24x64xbf16> to vector<24x64xbf16>
    %385 = arith.extf %384 : vector<24x64xbf16> to vector<24x64xf32>
    %386 = vector.extract_strided_slice %0 {offsets = [14, 0], sizes = [1, 64], strides = [1, 1]} : vector<27x64xf32> to vector<1x64xf32>
    %387 = vector.shape_cast %386 : vector<1x64xf32> to vector<64xf32>
    %388 = vector.shape_cast %387 : vector<64xf32> to vector<1x64xf32>
    %389 = vector.broadcast %388 : vector<1x64xf32> to vector<24x64xf32>
    %390 = arith.mulf %385, %389 : vector<24x64xf32>
    %391 = arith.addf %382, %390 : vector<24x64xf32>
    %c0_169 = arith.constant 0 : index
    %c2_170 = arith.constant 2 : index
    %c12_171 = arith.constant 12 : index
    %c0_172 = arith.constant 0 : index
    %392 = vector.load %arg1[%c0_169, %c2_170, %c12_171, %c0_172] : memref<1x4x38x64xbf16, #tpu.memory_space<vmem>>, vector<1x1x24x64xbf16>
    %393 = vector.shape_cast %392 : vector<1x1x24x64xbf16> to vector<24x64xbf16>
    %394 = arith.extf %393 : vector<24x64xbf16> to vector<24x64xf32>
    %395 = vector.extract_strided_slice %0 {offsets = [15, 0], sizes = [1, 64], strides = [1, 1]} : vector<27x64xf32> to vector<1x64xf32>
    %396 = vector.shape_cast %395 : vector<1x64xf32> to vector<64xf32>
    %397 = vector.shape_cast %396 : vector<64xf32> to vector<1x64xf32>
    %398 = vector.broadcast %397 : vector<1x64xf32> to vector<24x64xf32>
    %399 = arith.mulf %394, %398 : vector<24x64xf32>
    %400 = arith.addf %391, %399 : vector<24x64xf32>
    %c0_173 = arith.constant 0 : index
    %c2_174 = arith.constant 2 : index
    %c13_175 = arith.constant 13 : index
    %c0_176 = arith.constant 0 : index
    %401 = vector.load %arg1[%c0_173, %c2_174, %c13_175, %c0_176] : memref<1x4x38x64xbf16, #tpu.memory_space<vmem>>, vector<1x1x24x64xbf16>
    %402 = vector.shape_cast %401 : vector<1x1x24x64xbf16> to vector<24x64xbf16>
    %403 = arith.extf %402 : vector<24x64xbf16> to vector<24x64xf32>
    %404 = vector.extract_strided_slice %0 {offsets = [16, 0], sizes = [1, 64], strides = [1, 1]} : vector<27x64xf32> to vector<1x64xf32>
    %405 = vector.shape_cast %404 : vector<1x64xf32> to vector<64xf32>
    %406 = vector.shape_cast %405 : vector<64xf32> to vector<1x64xf32>
    %407 = vector.broadcast %406 : vector<1x64xf32> to vector<24x64xf32>
    %408 = arith.mulf %403, %407 : vector<24x64xf32>
    %409 = arith.addf %400, %408 : vector<24x64xf32>
    %c0_177 = arith.constant 0 : index
    %c2_178 = arith.constant 2 : index
    %c14_179 = arith.constant 14 : index
    %c0_180 = arith.constant 0 : index
    %410 = vector.load %arg1[%c0_177, %c2_178, %c14_179, %c0_180] : memref<1x4x38x64xbf16, #tpu.memory_space<vmem>>, vector<1x1x24x64xbf16>
    %411 = vector.shape_cast %410 : vector<1x1x24x64xbf16> to vector<24x64xbf16>
    %412 = arith.extf %411 : vector<24x64xbf16> to vector<24x64xf32>
    %413 = vector.extract_strided_slice %0 {offsets = [17, 0], sizes = [1, 64], strides = [1, 1]} : vector<27x64xf32> to vector<1x64xf32>
    %414 = vector.shape_cast %413 : vector<1x64xf32> to vector<64xf32>
    %415 = vector.shape_cast %414 : vector<64xf32> to vector<1x64xf32>
    %416 = vector.broadcast %415 : vector<1x64xf32> to vector<24x64xf32>
    %417 = arith.mulf %412, %416 : vector<24x64xf32>
    %418 = arith.addf %409, %417 : vector<24x64xf32>
    %c0_181 = arith.constant 0 : index
    %c3 = arith.constant 3 : index
    %c0_182 = arith.constant 0 : index
    %c0_183 = arith.constant 0 : index
    %419 = vector.load %arg1[%c0_181, %c3, %c0_182, %c0_183] : memref<1x4x38x64xbf16, #tpu.memory_space<vmem>>, vector<1x1x24x64xbf16>
    %420 = vector.shape_cast %419 : vector<1x1x24x64xbf16> to vector<24x64xbf16>
    %421 = arith.extf %420 : vector<24x64xbf16> to vector<24x64xf32>
    %422 = vector.extract_strided_slice %0 {offsets = [18, 0], sizes = [1, 64], strides = [1, 1]} : vector<27x64xf32> to vector<1x64xf32>
    %423 = vector.shape_cast %422 : vector<1x64xf32> to vector<64xf32>
    %424 = vector.shape_cast %423 : vector<64xf32> to vector<1x64xf32>
    %425 = vector.broadcast %424 : vector<1x64xf32> to vector<24x64xf32>
    %426 = arith.mulf %421, %425 : vector<24x64xf32>
    %427 = arith.addf %418, %426 : vector<24x64xf32>
    %c0_184 = arith.constant 0 : index
    %c3_185 = arith.constant 3 : index
    %c1_186 = arith.constant 1 : index
    %c0_187 = arith.constant 0 : index
    %428 = vector.load %arg1[%c0_184, %c3_185, %c1_186, %c0_187] : memref<1x4x38x64xbf16, #tpu.memory_space<vmem>>, vector<1x1x24x64xbf16>
    %429 = vector.shape_cast %428 : vector<1x1x24x64xbf16> to vector<24x64xbf16>
    %430 = arith.extf %429 : vector<24x64xbf16> to vector<24x64xf32>
    %431 = vector.extract_strided_slice %0 {offsets = [19, 0], sizes = [1, 64], strides = [1, 1]} : vector<27x64xf32> to vector<1x64xf32>
    %432 = vector.shape_cast %431 : vector<1x64xf32> to vector<64xf32>
    %433 = vector.shape_cast %432 : vector<64xf32> to vector<1x64xf32>
    %434 = vector.broadcast %433 : vector<1x64xf32> to vector<24x64xf32>
    %435 = arith.mulf %430, %434 : vector<24x64xf32>
    %436 = arith.addf %427, %435 : vector<24x64xf32>
    %c0_188 = arith.constant 0 : index
    %c3_189 = arith.constant 3 : index
    %c2_190 = arith.constant 2 : index
    %c0_191 = arith.constant 0 : index
    %437 = vector.load %arg1[%c0_188, %c3_189, %c2_190, %c0_191] : memref<1x4x38x64xbf16, #tpu.memory_space<vmem>>, vector<1x1x24x64xbf16>
    %438 = vector.shape_cast %437 : vector<1x1x24x64xbf16> to vector<24x64xbf16>
    %439 = arith.extf %438 : vector<24x64xbf16> to vector<24x64xf32>
    %440 = vector.extract_strided_slice %0 {offsets = [20, 0], sizes = [1, 64], strides = [1, 1]} : vector<27x64xf32> to vector<1x64xf32>
    %441 = vector.shape_cast %440 : vector<1x64xf32> to vector<64xf32>
    %442 = vector.shape_cast %441 : vector<64xf32> to vector<1x64xf32>
    %443 = vector.broadcast %442 : vector<1x64xf32> to vector<24x64xf32>
    %444 = arith.mulf %439, %443 : vector<24x64xf32>
    %445 = arith.addf %436, %444 : vector<24x64xf32>
    %c0_192 = arith.constant 0 : index
    %c3_193 = arith.constant 3 : index
    %c6_194 = arith.constant 6 : index
    %c0_195 = arith.constant 0 : index
    %446 = vector.load %arg1[%c0_192, %c3_193, %c6_194, %c0_195] : memref<1x4x38x64xbf16, #tpu.memory_space<vmem>>, vector<1x1x24x64xbf16>
    %447 = vector.shape_cast %446 : vector<1x1x24x64xbf16> to vector<24x64xbf16>
    %448 = arith.extf %447 : vector<24x64xbf16> to vector<24x64xf32>
    %449 = vector.extract_strided_slice %0 {offsets = [21, 0], sizes = [1, 64], strides = [1, 1]} : vector<27x64xf32> to vector<1x64xf32>
    %450 = vector.shape_cast %449 : vector<1x64xf32> to vector<64xf32>
    %451 = vector.shape_cast %450 : vector<64xf32> to vector<1x64xf32>
    %452 = vector.broadcast %451 : vector<1x64xf32> to vector<24x64xf32>
    %453 = arith.mulf %448, %452 : vector<24x64xf32>
    %454 = arith.addf %445, %453 : vector<24x64xf32>
    %c0_196 = arith.constant 0 : index
    %c3_197 = arith.constant 3 : index
    %c7_198 = arith.constant 7 : index
    %c0_199 = arith.constant 0 : index
    %455 = vector.load %arg1[%c0_196, %c3_197, %c7_198, %c0_199] : memref<1x4x38x64xbf16, #tpu.memory_space<vmem>>, vector<1x1x24x64xbf16>
    %456 = vector.shape_cast %455 : vector<1x1x24x64xbf16> to vector<24x64xbf16>
    %457 = arith.extf %456 : vector<24x64xbf16> to vector<24x64xf32>
    %458 = vector.extract_strided_slice %0 {offsets = [22, 0], sizes = [1, 64], strides = [1, 1]} : vector<27x64xf32> to vector<1x64xf32>
    %459 = vector.shape_cast %458 : vector<1x64xf32> to vector<64xf32>
    %460 = vector.shape_cast %459 : vector<64xf32> to vector<1x64xf32>
    %461 = vector.broadcast %460 : vector<1x64xf32> to vector<24x64xf32>
    %462 = arith.mulf %457, %461 : vector<24x64xf32>
    %463 = arith.addf %454, %462 : vector<24x64xf32>
    %c0_200 = arith.constant 0 : index
    %c3_201 = arith.constant 3 : index
    %c8_202 = arith.constant 8 : index
    %c0_203 = arith.constant 0 : index
    %464 = vector.load %arg1[%c0_200, %c3_201, %c8_202, %c0_203] : memref<1x4x38x64xbf16, #tpu.memory_space<vmem>>, vector<1x1x24x64xbf16>
    %465 = vector.shape_cast %464 : vector<1x1x24x64xbf16> to vector<24x64xbf16>
    %466 = arith.extf %465 : vector<24x64xbf16> to vector<24x64xf32>
    %467 = vector.extract_strided_slice %0 {offsets = [23, 0], sizes = [1, 64], strides = [1, 1]} : vector<27x64xf32> to vector<1x64xf32>
    %468 = vector.shape_cast %467 : vector<1x64xf32> to vector<64xf32>
    %469 = vector.shape_cast %468 : vector<64xf32> to vector<1x64xf32>
    %470 = vector.broadcast %469 : vector<1x64xf32> to vector<24x64xf32>
    %471 = arith.mulf %466, %470 : vector<24x64xf32>
    %472 = arith.addf %463, %471 : vector<24x64xf32>
    %c0_204 = arith.constant 0 : index
    %c3_205 = arith.constant 3 : index
    %c12_206 = arith.constant 12 : index
    %c0_207 = arith.constant 0 : index
    %473 = vector.load %arg1[%c0_204, %c3_205, %c12_206, %c0_207] : memref<1x4x38x64xbf16, #tpu.memory_space<vmem>>, vector<1x1x24x64xbf16>
    %474 = vector.shape_cast %473 : vector<1x1x24x64xbf16> to vector<24x64xbf16>
    %475 = arith.extf %474 : vector<24x64xbf16> to vector<24x64xf32>
    %476 = vector.extract_strided_slice %0 {offsets = [24, 0], sizes = [1, 64], strides = [1, 1]} : vector<27x64xf32> to vector<1x64xf32>
    %477 = vector.shape_cast %476 : vector<1x64xf32> to vector<64xf32>
    %478 = vector.shape_cast %477 : vector<64xf32> to vector<1x64xf32>
    %479 = vector.broadcast %478 : vector<1x64xf32> to vector<24x64xf32>
    %480 = arith.mulf %475, %479 : vector<24x64xf32>
    %481 = arith.addf %472, %480 : vector<24x64xf32>
    %c0_208 = arith.constant 0 : index
    %c3_209 = arith.constant 3 : index
    %c13_210 = arith.constant 13 : index
    %c0_211 = arith.constant 0 : index
    %482 = vector.load %arg1[%c0_208, %c3_209, %c13_210, %c0_211] : memref<1x4x38x64xbf16, #tpu.memory_space<vmem>>, vector<1x1x24x64xbf16>
    %483 = vector.shape_cast %482 : vector<1x1x24x64xbf16> to vector<24x64xbf16>
    %484 = arith.extf %483 : vector<24x64xbf16> to vector<24x64xf32>
    %485 = vector.extract_strided_slice %0 {offsets = [25, 0], sizes = [1, 64], strides = [1, 1]} : vector<27x64xf32> to vector<1x64xf32>
    %486 = vector.shape_cast %485 : vector<1x64xf32> to vector<64xf32>
    %487 = vector.shape_cast %486 : vector<64xf32> to vector<1x64xf32>
    %488 = vector.broadcast %487 : vector<1x64xf32> to vector<24x64xf32>
    %489 = arith.mulf %484, %488 : vector<24x64xf32>
    %490 = arith.addf %481, %489 : vector<24x64xf32>
    %c0_212 = arith.constant 0 : index
    %c3_213 = arith.constant 3 : index
    %c14_214 = arith.constant 14 : index
    %c0_215 = arith.constant 0 : index
    %491 = vector.load %arg1[%c0_212, %c3_213, %c14_214, %c0_215] : memref<1x4x38x64xbf16, #tpu.memory_space<vmem>>, vector<1x1x24x64xbf16>
    %492 = vector.shape_cast %491 : vector<1x1x24x64xbf16> to vector<24x64xbf16>
    %493 = arith.extf %492 : vector<24x64xbf16> to vector<24x64xf32>
    %494 = vector.extract_strided_slice %0 {offsets = [26, 0], sizes = [1, 64], strides = [1, 1]} : vector<27x64xf32> to vector<1x64xf32>
    %495 = vector.shape_cast %494 : vector<1x64xf32> to vector<64xf32>
    %496 = vector.shape_cast %495 : vector<64xf32> to vector<1x64xf32>
    %497 = vector.broadcast %496 : vector<1x64xf32> to vector<24x64xf32>
    %498 = arith.mulf %493, %497 : vector<24x64xf32>
    %499 = arith.addf %490, %498 : vector<24x64xf32>
    %500 = arith.truncf %499 : vector<24x64xf32> to vector<24x64xbf16>
    %c1_216 = arith.constant 1 : index
    %c0_217 = arith.constant 0 : index
    %c0_218 = arith.constant 0 : index
    %501 = vector.load %arg4[%c1_216, %c0_217, %c0_218] : memref<2x64x64xbf16, #tpu.memory_space<vmem>>, vector<1x64x64xbf16>
    %502 = vector.shape_cast %501 : vector<1x64x64xbf16> to vector<64x64xbf16>
    %cst_219 = arith.constant dense<0.000000e+00> : vector<24x64xf32>
    %503 = tpu.matmul %500, %502, %cst_219 {dimension_numbers = #tpu.dot_dimension_numbers<[1], [0], [0], [1], [0, 0, 1, 1], [], []>} : vector<24x64xbf16>, vector<64x64xbf16>, vector<24x64xf32> -> vector<24x64xf32>
    %504 = arith.addf %253, %503 : vector<24x64xf32>
    %c0_220 = arith.constant 0 : index
    %c0_221 = arith.constant 0 : index
    %c0_222 = arith.constant 0 : index
    %505 = vector.load %arg5[%c0_220, %c0_221, %c0_222] : memref<1x24x64xf32, #tpu.memory_space<vmem>>, vector<1x24x64xf32>
    %506 = vector.shape_cast %505 : vector<1x24x64xf32> to vector<24x64xf32>
    %507 = vector.shape_cast %504 : vector<24x64xf32> to vector<1x24x64xf32>
    tpu.vector_store %arg5[%c0_220, %c0_221, %c0_222], %507 {strides = array<i32>} : memref<1x24x64xf32, #tpu.memory_space<vmem>>, vector<1x24x64xf32>,
    return
  }
  func.func @transform_0(%arg0: i32) -> (i32, i32, i32, i32) {
    %c0_i32 = arith.constant 0 : i32
    %c0_i32_0 = arith.constant 0 : i32
    %c0_i32_1 = arith.constant 0 : i32
    %c0_i32_2 = arith.constant 0 : i32
    return %arg0, %c0_i32, %c0_i32_0, %c0_i32_1 : i32, i32, i32, i32
  }
  func.func @transform_1(%arg0: i32) -> (i32, i32) {
    %c0_i32 = arith.constant 0 : i32
    %c0_i32_0 = arith.constant 0 : i32
    %c0_i32_1 = arith.constant 0 : i32
    return %c0_i32, %c0_i32_0 : i32, i32
  }
  func.func @transform_2(%arg0: i32) -> (i32, i32) {
    %c0_i32 = arith.constant 0 : i32
    %c0_i32_0 = arith.constant 0 : i32
    %c0_i32_1 = arith.constant 0 : i32
    return %c0_i32, %c0_i32_0 : i32, i32
  }
  func.func @transform_3(%arg0: i32) -> (i32, i32, i32) {
    %c0_i32 = arith.constant 0 : i32
    %c0_i32_0 = arith.constant 0 : i32
    %c0_i32_1 = arith.constant 0 : i32
    %c0_i32_2 = arith.constant 0 : i32
    return %c0_i32, %c0_i32_0, %c0_i32_1 : i32, i32, i32
  }
  func.func @transform_4(%arg0: i32) -> (i32, i32, i32) {
    %c0_i32 = arith.constant 0 : i32
    %c0_i32_0 = arith.constant 0 : i32
    %c0_i32_1 = arith.constant 0 : i32
    return %arg0, %c0_i32, %c0_i32_0 : i32, i32, i32
  }
}

</mosaic_0001>

<llo_original>
// kernel: tile.83
$region0: #{tile.83}
  #allocation0 [shape = 's32[1]{0}', space=sflag, size = 0x4, scoped, tag = 'scoped memory for tile.83']
  %s0 = inlined_call_operand.vmem [shape: f32[64], index: 0, kind: input, shape index: {}]
  %s1 = inlined_call_operand.vmem [shape: f32[8,64], index: 1, kind: output, shape index: {}]
  // Predicated region
  $region2: #{tile.83} parent=0 // pred_check
    _
  $region3: #{tile.83} parent=0 // pred_check_branch
    %3 = sbr.rel (0) target = $region5
  $region4: #{tile.83} parent=0 // pred_region
    _
  $region5: #{tile.83} parent=0 // pred_fallthru
    _
  %v4 = vld [vmem:[%s0] ss:$0 sm:$0xff]
  %5 = vst [vmem:[%s1] sm:$0xff] %v4

// kernel: tile.84
$region0: #{tile.84}
  %s0 = inlined_call_operand.vmem [shape: f32[8,64], index: 0, kind: input, shape index: {}]
  %s1 = inlined_call_operand.vmem [shape: f32[1,512], index: 1, kind: output, shape index: {}]
  $region1: #{tile.84} parent=0
    #allocation0 [shape = 'u8[16384]{0}', space=vmem, size = 0x4000, scoped, tag = 'scoped mem for output reshape']
    %v2 = vld [vmem:[%s0] ss:$2 sm:$0xf]
    %vm3 = vcmask 523264
    %4 = vst.msk [vmem:[#allocation0] ss:$8 sm:$0xf] %vm3, %v2
    %s5 = scalar_lea.vmem %s0, 1
    %v6 = vld [vmem:[%s5] ss:$2 sm:$0xf]
    %7 = vrot.lane.b32.xlu0 %v6, 64
    %v8 = vpop.permute.xlu0 %7
    %vm9 = vcmask 1048064
    %10 = vst.msk [vmem:[#allocation0] ss:$8 sm:$0xf] %vm9, %v8
    %s12 = sshllo.u32 0, 1
    %v14 = vld [vmem:[#allocation0] sm:%s12]
    %s15 = sshllo.u32 0, 1
    %16 = vst [vmem:[%s1] sm:%s15] %v14
    %s17 = scalar_lea.vmem [#allocation0], 8
    %v18 = vld [vmem:[%s17] sm:%s12]
    %s19 = sshllo.u32 0, 1
    %s20 = scalar_lea.vmem %s1, 1
    %21 = vst [vmem:[%s20] sm:%s19] %v18
    %s22 = scalar_lea.vmem [#allocation0], 16
    %v23 = vld [vmem:[%s22] sm:%s12]
    %s24 = sshllo.u32 0, 1
    %s25 = smul.addr 1, 2
    %s26 = scalar_lea.vmem %s1, %s25
    %27 = vst [vmem:[%s26] sm:%s24] %v23
    %s28 = scalar_lea.vmem [#allocation0], 24
    %v29 = vld [vmem:[%s28] sm:%s12]
    %s30 = sshllo.u32 0, 1
    %s31 = smul.addr 1, 3
    %s32 = scalar_lea.vmem %s1, %s31
    %33 = vst [vmem:[%s32] sm:%s30] %v29

</llo_original>
